<compile_context>
chip_gen: v7x
topology: tpu7x:2x2x1
jax: 0.10.0
libtpu: 0.0.40
codegen_flags: <defaults>
</compile_context>

<pallas_src>
import jax
import jax.numpy as jnp
from jax.experimental import pallas as pl
from jax.experimental.pallas import tpu as pltpu


def _layer_norm(y, gamma, beta, eps=1e-5):
    mean = jnp.mean(y, axis=-1, keepdims=True)
    var = jnp.mean((y - mean) ** 2, axis=-1, keepdims=True)
    return (y - mean) * jax.lax.rsqrt(var + eps) * gamma + beta


def lnlstm_kernel(x_ref, wx_ref, bx_ref, wh_ref, bh_ref,
                  gx_ref, betax_ref, gh_ref, betah_ref, gc_ref, betac_ref,
                  o_ref, a_scr):
    BT, T, _ = x_ref.shape
    H = wh_ref.shape[0]
    G = 4 * H

    # ---- hoisted: fused input projection + LN_x for every (batch, time) row ----
    x2d = x_ref[...].reshape(BT * T, -1)
    ax = jnp.dot(x2d, wx_ref[...], preferred_element_type=jnp.float32) + bx_ref[...]
    ax = _layer_norm(ax, gx_ref[...], betax_ref[...])
    a_scr[...] = ax.reshape(BT, T, G)

    # loop-invariant parameters, read once
    wh = wh_ref[...]
    bh = bh_ref[...]
    g_lnh = gh_ref[...]
    b_lnh = betah_ref[...]
    g_lnc = gc_ref[...]
    b_lnc = betac_ref[...]

    def step(s, carry):
        # rows [:BT] = forward direction, rows [BT:] = backward direction
        h_prev, c_prev = carry                                   # (2*BT, H) each
        a_f = a_scr[:, pl.ds(s, 1), :].reshape(BT, G)            # input time s
        a_b = a_scr[:, pl.ds(T - 1 - s, 1), :].reshape(BT, G)    # input time T-1-s
        a = jnp.concatenate([a_f, a_b], axis=0)                  # (2*BT, G)

        gh = jnp.dot(h_prev, wh, preferred_element_type=jnp.float32) + bh
        gates = a + _layer_norm(gh, g_lnh, b_lnh)                # (2*BT, G)

        sig = jax.nn.sigmoid(gates)      # one full-width pass, slice afterwards
        tnh = jnp.tanh(gates)
        i_t = sig[:, 0 * H:1 * H]
        f_t = sig[:, 1 * H:2 * H]
        g_t = tnh[:, 2 * H:3 * H]
        o_t = sig[:, 3 * H:4 * H]

        c_new = f_t * c_prev + i_t * g_t
        h_new = o_t * jnp.tanh(_layer_norm(c_new, g_lnc, b_lnc))

        # forward output at time s (cols [:H]); backward output at time T-1-s (cols [H:]).
        o_ref[:, pl.ds(s, 1), 0:H] = (
            h_new[:BT].reshape(BT, 1, H).astype(o_ref.dtype))
        o_ref[:, pl.ds(T - 1 - s, 1), H:2 * H] = (
            h_new[BT:].reshape(BT, 1, H).astype(o_ref.dtype))
        return h_new, c_new

    h0 = jnp.zeros((2 * BT, H), jnp.float32)
    c0 = jnp.zeros((2 * BT, H), jnp.float32)
    jax.lax.fori_loop(0, T, step, (h0, c0), unroll=(T <= 16))


def _pick_batch_tile(batch, max_tile=8):
    for bt in range(min(batch, max_tile), 0, -1):
        if batch % bt == 0:
            return bt
    return 1


def lnlstm_forward(x, params, hidden_size, bidirectional=True):
    """x: (batch, seq_len, input_size) float32. Returns (output, None) like the module."""
    if not bidirectional:
        # TODO(synk): unidirectional (bidirectional=False) path not wired up; the
        # reference module defaults to bidirectional=True.
        raise NotImplementedError("only bidirectional=True is implemented")
    B, T, I = x.shape
    H = hidden_size // 2
    G = 4 * H
    BT = _pick_batch_tile(B)

    def cspec(shape):  # constant-index (grid-invariant) parameter block
        return pl.BlockSpec(shape, lambda b: (0, 0))

    out = pl.pallas_call(
        lnlstm_kernel,
        out_shape=jax.ShapeDtypeStruct((B, T, 2 * H), x.dtype),
        grid=(B // BT,),
        in_specs=[
            pl.BlockSpec((BT, T, I), lambda b: (b, 0, 0)),   # x batch tile
            cspec((I, G)), cspec((1, G)),                    # Wx^T, bx
            cspec((H, G)), cspec((1, G)),                    # Wh^T, bh
            cspec((1, G)), cspec((1, G)),                    # LN_x gamma/beta
            cspec((1, G)), cspec((1, G)),                    # LN_h gamma/beta
            cspec((1, H)), cspec((1, H)),                    # LN_c gamma/beta
        ],
        out_specs=pl.BlockSpec((BT, T, 2 * H), lambda b: (b, 0, 0)),
        scratch_shapes=[pltpu.VMEM((BT, T, G), jnp.float32)],
        compiler_params=pltpu.CompilerParams(dimension_semantics=("parallel",)),
    )(x,
      params["wx"], params["bx"], params["wh"], params["bh"],
      params["g_lnx"], params["b_lnx"], params["g_lnh"], params["b_lnh"],
      params["g_lnc"], params["b_lnc"])
    return out, None


def lnlstm_ref(x, params, hidden_size, bidirectional=True):
    """Pure-JAX reference mirroring the PyTorch forward (for self-check)."""
    B, T, _ = x.shape
    H = hidden_size // 2 if bidirectional else hidden_size
    wx, bx = params["wx"], params["bx"]
    wh, bh = params["wh"], params["bh"]

    def run(xseq):
        h = jnp.zeros((B, H), jnp.float32)
        c = jnp.zeros((B, H), jnp.float32)
        outs = []
        for t in range(T):
            gates = (_layer_norm(xseq[:, t] @ wx + bx, params["g_lnx"], params["b_lnx"])
                     + _layer_norm(h @ wh + bh, params["g_lnh"], params["b_lnh"]))
            i_t = jax.nn.sigmoid(gates[:, 0:H])
            f_t = jax.nn.sigmoid(gates[:, H:2 * H])
            g_t = jnp.tanh(gates[:, 2 * H:3 * H])
            o_t = jax.nn.sigmoid(gates[:, 3 * H:4 * H])
            c = f_t * c + i_t * g_t
            h = o_t * jnp.tanh(_layer_norm(c, params["g_lnc"], params["b_lnc"]))
            outs.append(h)
        return jnp.stack(outs, axis=1)          # (B, T, H)

    out_f = run(x)
    if not bidirectional:
        return out_f
    out_b = run(x[:, ::-1])[:, ::-1]
    return jnp.concatenate([out_f, out_b], axis=-1)


def init_params(key, input_size, hidden_size, bidirectional=True):
    """Deterministic synthetic init mirroring the module's Linear / LayerNorm shapes."""
    H = hidden_size // 2 if bidirectional else hidden_size
    G = 4 * H
    ks = jax.random.split(key, 10)
    sx = 1.0 / float(input_size) ** 0.5
    sh = 1.0 / float(H) ** 0.5
    wx_pt = sx * jax.random.normal(ks[0], (G, input_size), jnp.float32)  # nn.Linear (out, in)
    bx = sx * jax.random.normal(ks[1], (G,), jnp.float32)
    wh_pt = sh * jax.random.normal(ks[2], (G, H), jnp.float32)
    bh = sh * jax.random.normal(ks[3], (G,), jnp.float32)
    # PyTorch LayerNorm default init is ones/zeros; perturbed here so the affine path is
    # actually exercised by the self-check (forward math is identical either way).
    g_lnx = 1.0 + 0.1 * jax.random.normal(ks[4], (G,), jnp.float32)
    b_lnx = 0.1 * jax.random.normal(ks[5], (G,), jnp.float32)
    g_lnh = 1.0 + 0.1 * jax.random.normal(ks[6], (G,), jnp.float32)
    b_lnh = 0.1 * jax.random.normal(ks[7], (G,), jnp.float32)
    g_lnc = 1.0 + 0.1 * jax.random.normal(ks[8], (H,), jnp.float32)
    b_lnc = 0.1 * jax.random.normal(ks[9], (H,), jnp.float32)
    return {
        # kernel computes x @ W (== x @ W_pt.T), so store transposed weights
        "wx": wx_pt.T, "bx": bx.reshape(1, G),
        "wh": wh_pt.T, "bh": bh.reshape(1, G),
        "g_lnx": g_lnx.reshape(1, G), "b_lnx": b_lnx.reshape(1, G),
        "g_lnh": g_lnh.reshape(1, G), "b_lnh": b_lnh.reshape(1, G),
        "g_lnc": g_lnc.reshape(1, H), "b_lnc": b_lnc.reshape(1, H),
    }


if __name__ == "__main__":
    B, T, INPUT, HIDDEN = 2, 8, 32, 32        # bidirectional -> per-direction H = 16
    key = jax.random.PRNGKey(0)
    kp, kx = jax.random.split(key)
    params = init_params(kp, INPUT, HIDDEN, bidirectional=True)
    x = jax.random.normal(kx, (B, T, INPUT), jnp.float32)

    out, _ = lnlstm_forward(x, params, HIDDEN, bidirectional=True)
    out = jax.block_until_ready(out)
    assert out.shape == (B, T, HIDDEN)

    ref = lnlstm_ref(x, params, HIDDEN, bidirectional=True)
    max_err = float(jnp.max(jnp.abs(out - ref)))
    assert max_err < 1e-3, f"mismatch vs pure-JAX reference: {max_err}"
    print("KERNEL_OK")
</pallas_src>

<mosaic_0001>
module attributes {stable_mosaic.version = 11 : i64} {
  func.func @lnlstm_kernel(%arg0: i32, %arg1: memref<2x8x32xf32, #tpu.memory_space<vmem>>, %arg2: memref<32x64xf32, #tpu.memory_space<vmem>>, %arg3: memref<1x64xf32, #tpu.memory_space<vmem>>, %arg4: memref<16x64xf32, #tpu.memory_space<vmem>>, %arg5: memref<1x64xf32, #tpu.memory_space<vmem>>, %arg6: memref<1x64xf32, #tpu.memory_space<vmem>>, %arg7: memref<1x64xf32, #tpu.memory_space<vmem>>, %arg8: memref<1x64xf32, #tpu.memory_space<vmem>>, %arg9: memref<1x64xf32, #tpu.memory_space<vmem>>, %arg10: memref<1x16xf32, #tpu.memory_space<vmem>>, %arg11: memref<1x16xf32, #tpu.memory_space<vmem>>, %arg12: memref<2x8x32xf32, #tpu.memory_space<vmem>>, %arg13: memref<2x8x64xf32, #tpu.memory_space<vmem>>) attributes {dimension_semantics = [#tpu.dimension_semantics<parallel>], iteration_bounds = array<i64: 1>, scalar_prefetch = 0 : i64, scratch_operands = 1 : i64, tpu.core_type = #tpu.core_type<tc>, window_params = [{transform_indices = @transform_0, window_bounds = array<i64: 2, 8, 32>}, {pipeline_mode = #tpu.pipeline_mode<synchronous>, transform_indices = @transform_1, window_bounds = array<i64: 32, 64>}, {pipeline_mode = #tpu.pipeline_mode<synchronous>, transform_indices = @transform_2, window_bounds = array<i64: 1, 64>}, {pipeline_mode = #tpu.pipeline_mode<synchronous>, transform_indices = @transform_3, window_bounds = array<i64: 16, 64>}, {pipeline_mode = #tpu.pipeline_mode<synchronous>, transform_indices = @transform_4, window_bounds = array<i64: 1, 64>}, {pipeline_mode = #tpu.pipeline_mode<synchronous>, transform_indices = @transform_5, window_bounds = array<i64: 1, 64>}, {pipeline_mode = #tpu.pipeline_mode<synchronous>, transform_indices = @transform_6, window_bounds = array<i64: 1, 64>}, {pipeline_mode = #tpu.pipeline_mode<synchronous>, transform_indices = @transform_7, window_bounds = array<i64: 1, 64>}, {pipeline_mode = #tpu.pipeline_mode<synchronous>, transform_indices = @transform_8, window_bounds = array<i64: 1, 64>}, {pipeline_mode = #tpu.pipeline_mode<synchronous>, transform_indices = @transform_9, window_bounds = array<i64: 1, 16>}, {pipeline_mode = #tpu.pipeline_mode<synchronous>, transform_indices = @transform_10, window_bounds = array<i64: 1, 16>}, {transform_indices = @transform_11, window_bounds = array<i64: 2, 8, 32>}]} {
    %c0 = arith.constant 0 : index
    %c0_0 = arith.constant 0 : index
    %c0_1 = arith.constant 0 : index
    %0 = vector.load %arg1[%c0, %c0_0, %c0_1] : memref<2x8x32xf32, #tpu.memory_space<vmem>>, vector<2x8x32xf32>
    %1 = vector.shape_cast %0 : vector<2x8x32xf32> to vector<16x32xf32>
    %c0_2 = arith.constant 0 : index
    %c0_3 = arith.constant 0 : index
    %2 = vector.load %arg2[%c0_2, %c0_3] : memref<32x64xf32, #tpu.memory_space<vmem>>, vector<32x64xf32>
    %cst = arith.constant dense<0.000000e+00> : vector<16x64xf32>
    %3 = tpu.matmul %1, %2, %cst {dimension_numbers = #tpu.dot_dimension_numbers<[1], [0], [0], [1], [0, 0, 1, 1], [], []>} : vector<16x32xf32>, vector<32x64xf32>, vector<16x64xf32> -> vector<16x64xf32>
    %c0_4 = arith.constant 0 : index
    %c0_5 = arith.constant 0 : index
    %4 = vector.load %arg3[%c0_4, %c0_5] : memref<1x64xf32, #tpu.memory_space<vmem>>, vector<1x64xf32>
    %5 = vector.broadcast %4 : vector<1x64xf32> to vector<16x64xf32>
    %6 = arith.addf %3, %5 : vector<16x64xf32>
    %c0_6 = arith.constant 0 : index
    %c0_7 = arith.constant 0 : index
    %7 = vector.load %arg6[%c0_6, %c0_7] : memref<1x64xf32, #tpu.memory_space<vmem>>, vector<1x64xf32>
    %c0_8 = arith.constant 0 : index
    %c0_9 = arith.constant 0 : index
    %8 = vector.load %arg7[%c0_8, %c0_9] : memref<1x64xf32, #tpu.memory_space<vmem>>, vector<1x64xf32>
    %cst_10 = arith.constant dense<0.000000e+00> : vector<16xf32>
    %9 = vector.multi_reduction <add>, %6, %cst_10 [1] : vector<16x64xf32> to vector<16xf32>
    %10 = vector.shape_cast %9 : vector<16xf32> to vector<16x1xf32>
    %cst_11 = arith.constant 6.400000e+01 : f32
    %11 = vector.broadcast %cst_11 : f32 to vector<16x1xf32>
    %12 = arith.divf %10, %11 : vector<16x1xf32>
    %13 = vector.broadcast %12 : vector<16x1xf32> to vector<16x64xf32>
    %14 = arith.subf %6, %13 : vector<16x64xf32>
    %15 = arith.mulf %14, %14 : vector<16x64xf32>
    %cst_12 = arith.constant dense<0.000000e+00> : vector<16xf32>
    %16 = vector.multi_reduction <add>, %15, %cst_12 [1] : vector<16x64xf32> to vector<16xf32>
    %17 = vector.shape_cast %16 : vector<16xf32> to vector<16x1xf32>
    %cst_13 = arith.constant 6.400000e+01 : f32
    %18 = vector.broadcast %cst_13 : f32 to vector<16x1xf32>
    %19 = arith.divf %17, %18 : vector<16x1xf32>
    %20 = vector.broadcast %12 : vector<16x1xf32> to vector<16x64xf32>
    %21 = arith.subf %6, %20 : vector<16x64xf32>
    %cst_14 = arith.constant 9.99999974E-6 : f32
    %22 = vector.broadcast %cst_14 : f32 to vector<16x1xf32>
    %23 = arith.addf %19, %22 : vector<16x1xf32>
    %24 = math.rsqrt %23 : vector<16x1xf32>
    %25 = vector.broadcast %24 : vector<16x1xf32> to vector<16x64xf32>
    %26 = arith.mulf %21, %25 : vector<16x64xf32>
    %27 = vector.broadcast %7 : vector<1x64xf32> to vector<16x64xf32>
    %28 = arith.mulf %26, %27 : vector<16x64xf32>
    %29 = vector.broadcast %8 : vector<1x64xf32> to vector<16x64xf32>
    %30 = arith.addf %28, %29 : vector<16x64xf32>
    %31 = vector.shape_cast %30 : vector<16x64xf32> to vector<2x8x64xf32>
    %c0_15 = arith.constant 0 : index
    %c0_16 = arith.constant 0 : index
    %c0_17 = arith.constant 0 : index
    %32 = vector.load %arg13[%c0_15, %c0_16, %c0_17] : memref<2x8x64xf32, #tpu.memory_space<vmem>>, vector<2x8x64xf32>
    tpu.vector_store %arg13[%c0_15, %c0_16, %c0_17], %31 {strides = array<i32>} : memref<2x8x64xf32, #tpu.memory_space<vmem>>, vector<2x8x64xf32>,
    %c0_18 = arith.constant 0 : index
    %c0_19 = arith.constant 0 : index
    %33 = vector.load %arg4[%c0_18, %c0_19] : memref<16x64xf32, #tpu.memory_space<vmem>>, vector<16x64xf32>
    %c0_20 = arith.constant 0 : index
    %c0_21 = arith.constant 0 : index
    %34 = vector.load %arg5[%c0_20, %c0_21] : memref<1x64xf32, #tpu.memory_space<vmem>>, vector<1x64xf32>
    %c0_22 = arith.constant 0 : index
    %c0_23 = arith.constant 0 : index
    %35 = vector.load %arg8[%c0_22, %c0_23] : memref<1x64xf32, #tpu.memory_space<vmem>>, vector<1x64xf32>
    %c0_24 = arith.constant 0 : index
    %c0_25 = arith.constant 0 : index
    %36 = vector.load %arg9[%c0_24, %c0_25] : memref<1x64xf32, #tpu.memory_space<vmem>>, vector<1x64xf32>
    %c0_26 = arith.constant 0 : index
    %c0_27 = arith.constant 0 : index
    %37 = vector.load %arg10[%c0_26, %c0_27] : memref<1x16xf32, #tpu.memory_space<vmem>>, vector<1x16xf32>
    %c0_28 = arith.constant 0 : index
    %c0_29 = arith.constant 0 : index
    %38 = vector.load %arg11[%c0_28, %c0_29] : memref<1x16xf32, #tpu.memory_space<vmem>>, vector<1x16xf32>
    %cst_30 = arith.constant 0.000000e+00 : f32
    %39 = vector.broadcast %cst_30 : f32 to vector<4x16xf32>
    %cst_31 = arith.constant 0.000000e+00 : f32
    %40 = vector.broadcast %cst_31 : f32 to vector<4x16xf32>
    %c0_i32 = arith.constant 0 : i32
    %c0_32 = arith.constant 0 : index
    %41 = arith.index_cast %c0_i32 : i32 to index
    %c0_33 = arith.constant 0 : index
    %42 = vector.load %arg13[%c0_32, %41, %c0_33] : memref<2x8x64xf32, #tpu.memory_space<vmem>>, vector<2x1x64xf32>
    %43 = vector.shape_cast %42 : vector<2x1x64xf32> to vector<2x64xf32>
    %c7_i32 = arith.constant 7 : i32
    %44 = arith.subi %c7_i32, %c0_i32 : i32
    %c0_34 = arith.constant 0 : index
    %45 = arith.index_cast %44 : i32 to index
    %c0_35 = arith.constant 0 : index
    %46 = vector.load %arg13[%c0_34, %45, %c0_35] : memref<2x8x64xf32, #tpu.memory_space<vmem>>, vector<2x1x64xf32>
    %47 = vector.shape_cast %46 : vector<2x1x64xf32> to vector<2x64xf32>
    %48 = tpu.concatenate %43, %47 in 0 : vector<2x64xf32>, vector<2x64xf32> -> vector<4x64xf32>
    %cst_36 = arith.constant dense<0.000000e+00> : vector<4x64xf32>
    %49 = tpu.matmul %39, %33, %cst_36 {dimension_numbers = #tpu.dot_dimension_numbers<[1], [0], [0], [1], [0, 0, 1, 1], [], []>} : vector<4x16xf32>, vector<16x64xf32>, vector<4x64xf32> -> vector<4x64xf32>
    %50 = vector.broadcast %34 : vector<1x64xf32> to vector<4x64xf32>
    %51 = arith.addf %49, %50 : vector<4x64xf32>
    %cst_37 = arith.constant dense<0.000000e+00> : vector<4xf32>
    %52 = vector.multi_reduction <add>, %51, %cst_37 [1] : vector<4x64xf32> to vector<4xf32>
    %53 = vector.shape_cast %52 : vector<4xf32> to vector<4x1xf32>
    %cst_38 = arith.constant 6.400000e+01 : f32
    %54 = vector.broadcast %cst_38 : f32 to vector<4x1xf32>
    %55 = arith.divf %53, %54 : vector<4x1xf32>
    %56 = vector.broadcast %55 : vector<4x1xf32> to vector<4x64xf32>
    %57 = arith.subf %51, %56 : vector<4x64xf32>
    %58 = arith.mulf %57, %57 : vector<4x64xf32>
    %cst_39 = arith.constant dense<0.000000e+00> : vector<4xf32>
    %59 = vector.multi_reduction <add>, %58, %cst_39 [1] : vector<4x64xf32> to vector<4xf32>
    %60 = vector.shape_cast %59 : vector<4xf32> to vector<4x1xf32>
    %cst_40 = arith.constant 6.400000e+01 : f32
    %61 = vector.broadcast %cst_40 : f32 to vector<4x1xf32>
    %62 = arith.divf %60, %61 : vector<4x1xf32>
    %63 = vector.broadcast %55 : vector<4x1xf32> to vector<4x64xf32>
    %64 = arith.subf %51, %63 : vector<4x64xf32>
    %cst_41 = arith.constant 9.99999974E-6 : f32
    %65 = vector.broadcast %cst_41 : f32 to vector<4x1xf32>
    %66 = arith.addf %62, %65 : vector<4x1xf32>
    %67 = math.rsqrt %66 : vector<4x1xf32>
    %68 = vector.broadcast %67 : vector<4x1xf32> to vector<4x64xf32>
    %69 = arith.mulf %64, %68 : vector<4x64xf32>
    %70 = vector.broadcast %35 : vector<1x64xf32> to vector<4x64xf32>
    %71 = arith.mulf %69, %70 : vector<4x64xf32>
    %72 = vector.broadcast %36 : vector<1x64xf32> to vector<4x64xf32>
    %73 = arith.addf %71, %72 : vector<4x64xf32>
    %74 = arith.addf %48, %73 : vector<4x64xf32>
    %75 = arith.negf %74 : vector<4x64xf32>
    %76 = math.exp %75 : vector<4x64xf32>
    %cst_42 = arith.constant 1.000000e+00 : f32
    %77 = vector.broadcast %cst_42 : f32 to vector<4x64xf32>
    %78 = arith.addf %77, %76 : vector<4x64xf32>
    %79 = arith.divf %77, %78 : vector<4x64xf32>
    %80 = math.tanh %74 : vector<4x64xf32>
    %81 = vector.extract_strided_slice %79 {offsets = [0, 0], sizes = [4, 16], strides = [1, 1]} : vector<4x64xf32> to vector<4x16xf32>
    %82 = vector.extract_strided_slice %79 {offsets = [0, 16], sizes = [4, 16], strides = [1, 1]} : vector<4x64xf32> to vector<4x16xf32>
    %83 = vector.extract_strided_slice %80 {offsets = [0, 32], sizes = [4, 16], strides = [1, 1]} : vector<4x64xf32> to vector<4x16xf32>
    %84 = vector.extract_strided_slice %79 {offsets = [0, 48], sizes = [4, 16], strides = [1, 1]} : vector<4x64xf32> to vector<4x16xf32>
    %85 = arith.mulf %82, %40 : vector<4x16xf32>
    %86 = arith.mulf %81, %83 : vector<4x16xf32>
    %87 = arith.addf %85, %86 : vector<4x16xf32>
    %cst_43 = arith.constant dense<0.000000e+00> : vector<4xf32>
    %88 = vector.multi_reduction <add>, %87, %cst_43 [1] : vector<4x16xf32> to vector<4xf32>
    %89 = vector.shape_cast %88 : vector<4xf32> to vector<4x1xf32>
    %cst_44 = arith.constant 1.600000e+01 : f32
    %90 = vector.broadcast %cst_44 : f32 to vector<4x1xf32>
    %91 = arith.divf %89, %90 : vector<4x1xf32>
    %92 = vector.broadcast %91 : vector<4x1xf32> to vector<4x16xf32>
    %93 = arith.subf %87, %92 : vector<4x16xf32>
    %94 = arith.mulf %93, %93 : vector<4x16xf32>
    %cst_45 = arith.constant dense<0.000000e+00> : vector<4xf32>
    %95 = vector.multi_reduction <add>, %94, %cst_45 [1] : vector<4x16xf32> to vector<4xf32>
    %96 = vector.shape_cast %95 : vector<4xf32> to vector<4x1xf32>
    %cst_46 = arith.constant 1.600000e+01 : f32
    %97 = vector.broadcast %cst_46 : f32 to vector<4x1xf32>
    %98 = arith.divf %96, %97 : vector<4x1xf32>
    %99 = vector.broadcast %91 : vector<4x1xf32> to vector<4x16xf32>
    %100 = arith.subf %87, %99 : vector<4x16xf32>
    %cst_47 = arith.constant 9.99999974E-6 : f32
    %101 = vector.broadcast %cst_47 : f32 to vector<4x1xf32>
    %102 = arith.addf %98, %101 : vector<4x1xf32>
    %103 = math.rsqrt %102 : vector<4x1xf32>
    %104 = vector.broadcast %103 : vector<4x1xf32> to vector<4x16xf32>
    %105 = arith.mulf %100, %104 : vector<4x16xf32>
    %106 = vector.broadcast %37 : vector<1x16xf32> to vector<4x16xf32>
    %107 = arith.mulf %105, %106 : vector<4x16xf32>
    %108 = vector.broadcast %38 : vector<1x16xf32> to vector<4x16xf32>
    %109 = arith.addf %107, %108 : vector<4x16xf32>
    %110 = math.tanh %109 : vector<4x16xf32>
    %111 = arith.mulf %84, %110 : vector<4x16xf32>
    %112 = vector.extract_strided_slice %111 {offsets = [0, 0], sizes = [2, 16], strides = [1, 1]} : vector<4x16xf32> to vector<2x16xf32>
    %113 = vector.shape_cast %112 : vector<2x16xf32> to vector<2x1x16xf32>
    %c0_48 = arith.constant 0 : index
    %114 = arith.index_cast %c0_i32 : i32 to index
    %c0_49 = arith.constant 0 : index
    %115 = vector.load %arg12[%c0_48, %114, %c0_49] : memref<2x8x32xf32, #tpu.memory_space<vmem>>, vector<2x1x16xf32>
    tpu.vector_store %arg12[%c0_48, %114, %c0_49], %113 {strides = array<i32>} : memref<2x8x32xf32, #tpu.memory_space<vmem>>, vector<2x1x16xf32>,
    %116 = vector.extract_strided_slice %111 {offsets = [2, 0], sizes = [2, 16], strides = [1, 1]} : vector<4x16xf32> to vector<2x16xf32>
    %117 = vector.shape_cast %116 : vector<2x16xf32> to vector<2x1x16xf32>
    %c7_i32_50 = arith.constant 7 : i32
    %118 = arith.subi %c7_i32_50, %c0_i32 : i32
    %c0_51 = arith.constant 0 : index
    %119 = arith.index_cast %118 : i32 to index
    %c16 = arith.constant 16 : index
    %120 = vector.load %arg12[%c0_51, %119, %c16] : memref<2x8x32xf32, #tpu.memory_space<vmem>>, vector<2x1x16xf32>
    tpu.vector_store %arg12[%c0_51, %119, %c16], %117 {strides = array<i32>} : memref<2x8x32xf32, #tpu.memory_space<vmem>>, vector<2x1x16xf32>,
    %c1_i32 = arith.constant 1 : i32
    %c0_52 = arith.constant 0 : index
    %121 = arith.index_cast %c1_i32 : i32 to index
    %c0_53 = arith.constant 0 : index
    %122 = vector.load %arg13[%c0_52, %121, %c0_53] : memref<2x8x64xf32, #tpu.memory_space<vmem>>, vector<2x1x64xf32>
    %123 = vector.shape_cast %122 : vector<2x1x64xf32> to vector<2x64xf32>
    %c7_i32_54 = arith.constant 7 : i32
    %124 = arith.subi %c7_i32_54, %c1_i32 : i32
    %c0_55 = arith.constant 0 : index
    %125 = arith.index_cast %124 : i32 to index
    %c0_56 = arith.constant 0 : index
    %126 = vector.load %arg13[%c0_55, %125, %c0_56] : memref<2x8x64xf32, #tpu.memory_space<vmem>>, vector<2x1x64xf32>
    %127 = vector.shape_cast %126 : vector<2x1x64xf32> to vector<2x64xf32>
    %128 = tpu.concatenate %123, %127 in 0 : vector<2x64xf32>, vector<2x64xf32> -> vector<4x64xf32>
    %cst_57 = arith.constant dense<0.000000e+00> : vector<4x64xf32>
    %129 = tpu.matmul %111, %33, %cst_57 {dimension_numbers = #tpu.dot_dimension_numbers<[1], [0], [0], [1], [0, 0, 1, 1], [], []>} : vector<4x16xf32>, vector<16x64xf32>, vector<4x64xf32> -> vector<4x64xf32>
    %130 = vector.broadcast %34 : vector<1x64xf32> to vector<4x64xf32>
    %131 = arith.addf %129, %130 : vector<4x64xf32>
    %cst_58 = arith.constant dense<0.000000e+00> : vector<4xf32>
    %132 = vector.multi_reduction <add>, %131, %cst_58 [1] : vector<4x64xf32> to vector<4xf32>
    %133 = vector.shape_cast %132 : vector<4xf32> to vector<4x1xf32>
    %cst_59 = arith.constant 6.400000e+01 : f32
    %134 = vector.broadcast %cst_59 : f32 to vector<4x1xf32>
    %135 = arith.divf %133, %134 : vector<4x1xf32>
    %136 = vector.broadcast %135 : vector<4x1xf32> to vector<4x64xf32>
    %137 = arith.subf %131, %136 : vector<4x64xf32>
    %138 = arith.mulf %137, %137 : vector<4x64xf32>
    %cst_60 = arith.constant dense<0.000000e+00> : vector<4xf32>
    %139 = vector.multi_reduction <add>, %138, %cst_60 [1] : vector<4x64xf32> to vector<4xf32>
    %140 = vector.shape_cast %139 : vector<4xf32> to vector<4x1xf32>
    %cst_61 = arith.constant 6.400000e+01 : f32
    %141 = vector.broadcast %cst_61 : f32 to vector<4x1xf32>
    %142 = arith.divf %140, %141 : vector<4x1xf32>
    %143 = vector.broadcast %135 : vector<4x1xf32> to vector<4x64xf32>
    %144 = arith.subf %131, %143 : vector<4x64xf32>
    %cst_62 = arith.constant 9.99999974E-6 : f32
    %145 = vector.broadcast %cst_62 : f32 to vector<4x1xf32>
    %146 = arith.addf %142, %145 : vector<4x1xf32>
    %147 = math.rsqrt %146 : vector<4x1xf32>
    %148 = vector.broadcast %147 : vector<4x1xf32> to vector<4x64xf32>
    %149 = arith.mulf %144, %148 : vector<4x64xf32>
    %150 = vector.broadcast %35 : vector<1x64xf32> to vector<4x64xf32>
    %151 = arith.mulf %149, %150 : vector<4x64xf32>
    %152 = vector.broadcast %36 : vector<1x64xf32> to vector<4x64xf32>
    %153 = arith.addf %151, %152 : vector<4x64xf32>
    %154 = arith.addf %128, %153 : vector<4x64xf32>
    %155 = arith.negf %154 : vector<4x64xf32>
    %156 = math.exp %155 : vector<4x64xf32>
    %cst_63 = arith.constant 1.000000e+00 : f32
    %157 = vector.broadcast %cst_63 : f32 to vector<4x64xf32>
    %158 = arith.addf %157, %156 : vector<4x64xf32>
    %159 = arith.divf %157, %158 : vector<4x64xf32>
    %160 = math.tanh %154 : vector<4x64xf32>
    %161 = vector.extract_strided_slice %159 {offsets = [0, 0], sizes = [4, 16], strides = [1, 1]} : vector<4x64xf32> to vector<4x16xf32>
    %162 = vector.extract_strided_slice %159 {offsets = [0, 16], sizes = [4, 16], strides = [1, 1]} : vector<4x64xf32> to vector<4x16xf32>
    %163 = vector.extract_strided_slice %160 {offsets = [0, 32], sizes = [4, 16], strides = [1, 1]} : vector<4x64xf32> to vector<4x16xf32>
    %164 = vector.extract_strided_slice %159 {offsets = [0, 48], sizes = [4, 16], strides = [1, 1]} : vector<4x64xf32> to vector<4x16xf32>
    %165 = arith.mulf %162, %87 : vector<4x16xf32>
    %166 = arith.mulf %161, %163 : vector<4x16xf32>
    %167 = arith.addf %165, %166 : vector<4x16xf32>
    %cst_64 = arith.constant dense<0.000000e+00> : vector<4xf32>
    %168 = vector.multi_reduction <add>, %167, %cst_64 [1] : vector<4x16xf32> to vector<4xf32>
    %169 = vector.shape_cast %168 : vector<4xf32> to vector<4x1xf32>
    %cst_65 = arith.constant 1.600000e+01 : f32
    %170 = vector.broadcast %cst_65 : f32 to vector<4x1xf32>
    %171 = arith.divf %169, %170 : vector<4x1xf32>
    %172 = vector.broadcast %171 : vector<4x1xf32> to vector<4x16xf32>
    %173 = arith.subf %167, %172 : vector<4x16xf32>
    %174 = arith.mulf %173, %173 : vector<4x16xf32>
    %cst_66 = arith.constant dense<0.000000e+00> : vector<4xf32>
    %175 = vector.multi_reduction <add>, %174, %cst_66 [1] : vector<4x16xf32> to vector<4xf32>
    %176 = vector.shape_cast %175 : vector<4xf32> to vector<4x1xf32>
    %cst_67 = arith.constant 1.600000e+01 : f32
    %177 = vector.broadcast %cst_67 : f32 to vector<4x1xf32>
    %178 = arith.divf %176, %177 : vector<4x1xf32>
    %179 = vector.broadcast %171 : vector<4x1xf32> to vector<4x16xf32>
    %180 = arith.subf %167, %179 : vector<4x16xf32>
    %cst_68 = arith.constant 9.99999974E-6 : f32
    %181 = vector.broadcast %cst_68 : f32 to vector<4x1xf32>
    %182 = arith.addf %178, %181 : vector<4x1xf32>
    %183 = math.rsqrt %182 : vector<4x1xf32>
    %184 = vector.broadcast %183 : vector<4x1xf32> to vector<4x16xf32>
    %185 = arith.mulf %180, %184 : vector<4x16xf32>
    %186 = vector.broadcast %37 : vector<1x16xf32> to vector<4x16xf32>
    %187 = arith.mulf %185, %186 : vector<4x16xf32>
    %188 = vector.broadcast %38 : vector<1x16xf32> to vector<4x16xf32>
    %189 = arith.addf %187, %188 : vector<4x16xf32>
    %190 = math.tanh %189 : vector<4x16xf32>
    %191 = arith.mulf %164, %190 : vector<4x16xf32>
    %192 = vector.extract_strided_slice %191 {offsets = [0, 0], sizes = [2, 16], strides = [1, 1]} : vector<4x16xf32> to vector<2x16xf32>
    %193 = vector.shape_cast %192 : vector<2x16xf32> to vector<2x1x16xf32>
    %c0_69 = arith.constant 0 : index
    %194 = arith.index_cast %c1_i32 : i32 to index
    %c0_70 = arith.constant 0 : index
    %195 = vector.load %arg12[%c0_69, %194, %c0_70] : memref<2x8x32xf32, #tpu.memory_space<vmem>>, vector<2x1x16xf32>
    tpu.vector_store %arg12[%c0_69, %194, %c0_70], %193 {strides = array<i32>} : memref<2x8x32xf32, #tpu.memory_space<vmem>>, vector<2x1x16xf32>,
    %196 = vector.extract_strided_slice %191 {offsets = [2, 0], sizes = [2, 16], strides = [1, 1]} : vector<4x16xf32> to vector<2x16xf32>
    %197 = vector.shape_cast %196 : vector<2x16xf32> to vector<2x1x16xf32>
    %c7_i32_71 = arith.constant 7 : i32
    %198 = arith.subi %c7_i32_71, %c1_i32 : i32
    %c0_72 = arith.constant 0 : index
    %199 = arith.index_cast %198 : i32 to index
    %c16_73 = arith.constant 16 : index
    %200 = vector.load %arg12[%c0_72, %199, %c16_73] : memref<2x8x32xf32, #tpu.memory_space<vmem>>, vector<2x1x16xf32>
    tpu.vector_store %arg12[%c0_72, %199, %c16_73], %197 {strides = array<i32>} : memref<2x8x32xf32, #tpu.memory_space<vmem>>, vector<2x1x16xf32>,
    %c2_i32 = arith.constant 2 : i32
    %c0_74 = arith.constant 0 : index
    %201 = arith.index_cast %c2_i32 : i32 to index
    %c0_75 = arith.constant 0 : index
    %202 = vector.load %arg13[%c0_74, %201, %c0_75] : memref<2x8x64xf32, #tpu.memory_space<vmem>>, vector<2x1x64xf32>
    %203 = vector.shape_cast %202 : vector<2x1x64xf32> to vector<2x64xf32>
    %c7_i32_76 = arith.constant 7 : i32
    %204 = arith.subi %c7_i32_76, %c2_i32 : i32
    %c0_77 = arith.constant 0 : index
    %205 = arith.index_cast %204 : i32 to index
    %c0_78 = arith.constant 0 : index
    %206 = vector.load %arg13[%c0_77, %205, %c0_78] : memref<2x8x64xf32, #tpu.memory_space<vmem>>, vector<2x1x64xf32>
    %207 = vector.shape_cast %206 : vector<2x1x64xf32> to vector<2x64xf32>
    %208 = tpu.concatenate %203, %207 in 0 : vector<2x64xf32>, vector<2x64xf32> -> vector<4x64xf32>
    %cst_79 = arith.constant dense<0.000000e+00> : vector<4x64xf32>
    %209 = tpu.matmul %191, %33, %cst_79 {dimension_numbers = #tpu.dot_dimension_numbers<[1], [0], [0], [1], [0, 0, 1, 1], [], []>} : vector<4x16xf32>, vector<16x64xf32>, vector<4x64xf32> -> vector<4x64xf32>
    %210 = vector.broadcast %34 : vector<1x64xf32> to vector<4x64xf32>
    %211 = arith.addf %209, %210 : vector<4x64xf32>
    %cst_80 = arith.constant dense<0.000000e+00> : vector<4xf32>
    %212 = vector.multi_reduction <add>, %211, %cst_80 [1] : vector<4x64xf32> to vector<4xf32>
    %213 = vector.shape_cast %212 : vector<4xf32> to vector<4x1xf32>
    %cst_81 = arith.constant 6.400000e+01 : f32
    %214 = vector.broadcast %cst_81 : f32 to vector<4x1xf32>
    %215 = arith.divf %213, %214 : vector<4x1xf32>
    %216 = vector.broadcast %215 : vector<4x1xf32> to vector<4x64xf32>
    %217 = arith.subf %211, %216 : vector<4x64xf32>
    %218 = arith.mulf %217, %217 : vector<4x64xf32>
    %cst_82 = arith.constant dense<0.000000e+00> : vector<4xf32>
    %219 = vector.multi_reduction <add>, %218, %cst_82 [1] : vector<4x64xf32> to vector<4xf32>
    %220 = vector.shape_cast %219 : vector<4xf32> to vector<4x1xf32>
    %cst_83 = arith.constant 6.400000e+01 : f32
    %221 = vector.broadcast %cst_83 : f32 to vector<4x1xf32>
    %222 = arith.divf %220, %221 : vector<4x1xf32>
    %223 = vector.broadcast %215 : vector<4x1xf32> to vector<4x64xf32>
    %224 = arith.subf %211, %223 : vector<4x64xf32>
    %cst_84 = arith.constant 9.99999974E-6 : f32
    %225 = vector.broadcast %cst_84 : f32 to vector<4x1xf32>
    %226 = arith.addf %222, %225 : vector<4x1xf32>
    %227 = math.rsqrt %226 : vector<4x1xf32>
    %228 = vector.broadcast %227 : vector<4x1xf32> to vector<4x64xf32>
    %229 = arith.mulf %224, %228 : vector<4x64xf32>
    %230 = vector.broadcast %35 : vector<1x64xf32> to vector<4x64xf32>
    %231 = arith.mulf %229, %230 : vector<4x64xf32>
    %232 = vector.broadcast %36 : vector<1x64xf32> to vector<4x64xf32>
    %233 = arith.addf %231, %232 : vector<4x64xf32>
    %234 = arith.addf %208, %233 : vector<4x64xf32>
    %235 = arith.negf %234 : vector<4x64xf32>
    %236 = math.exp %235 : vector<4x64xf32>
    %cst_85 = arith.constant 1.000000e+00 : f32
    %237 = vector.broadcast %cst_85 : f32 to vector<4x64xf32>
    %238 = arith.addf %237, %236 : vector<4x64xf32>
    %239 = arith.divf %237, %238 : vector<4x64xf32>
    %240 = math.tanh %234 : vector<4x64xf32>
    %241 = vector.extract_strided_slice %239 {offsets = [0, 0], sizes = [4, 16], strides = [1, 1]} : vector<4x64xf32> to vector<4x16xf32>
    %242 = vector.extract_strided_slice %239 {offsets = [0, 16], sizes = [4, 16], strides = [1, 1]} : vector<4x64xf32> to vector<4x16xf32>
    %243 = vector.extract_strided_slice %240 {offsets = [0, 32], sizes = [4, 16], strides = [1, 1]} : vector<4x64xf32> to vector<4x16xf32>
    %244 = vector.extract_strided_slice %239 {offsets = [0, 48], sizes = [4, 16], strides = [1, 1]} : vector<4x64xf32> to vector<4x16xf32>
    %245 = arith.mulf %242, %167 : vector<4x16xf32>
    %246 = arith.mulf %241, %243 : vector<4x16xf32>
    %247 = arith.addf %245, %246 : vector<4x16xf32>
    %cst_86 = arith.constant dense<0.000000e+00> : vector<4xf32>
    %248 = vector.multi_reduction <add>, %247, %cst_86 [1] : vector<4x16xf32> to vector<4xf32>
    %249 = vector.shape_cast %248 : vector<4xf32> to vector<4x1xf32>
    %cst_87 = arith.constant 1.600000e+01 : f32
    %250 = vector.broadcast %cst_87 : f32 to vector<4x1xf32>
    %251 = arith.divf %249, %250 : vector<4x1xf32>
    %252 = vector.broadcast %251 : vector<4x1xf32> to vector<4x16xf32>
    %253 = arith.subf %247, %252 : vector<4x16xf32>
    %254 = arith.mulf %253, %253 : vector<4x16xf32>
    %cst_88 = arith.constant dense<0.000000e+00> : vector<4xf32>
    %255 = vector.multi_reduction <add>, %254, %cst_88 [1] : vector<4x16xf32> to vector<4xf32>
    %256 = vector.shape_cast %255 : vector<4xf32> to vector<4x1xf32>
    %cst_89 = arith.constant 1.600000e+01 : f32
    %257 = vector.broadcast %cst_89 : f32 to vector<4x1xf32>
    %258 = arith.divf %256, %257 : vector<4x1xf32>
    %259 = vector.broadcast %251 : vector<4x1xf32> to vector<4x16xf32>
    %260 = arith.subf %247, %259 : vector<4x16xf32>
    %cst_90 = arith.constant 9.99999974E-6 : f32
    %261 = vector.broadcast %cst_90 : f32 to vector<4x1xf32>
    %262 = arith.addf %258, %261 : vector<4x1xf32>
    %263 = math.rsqrt %262 : vector<4x1xf32>
    %264 = vector.broadcast %263 : vector<4x1xf32> to vector<4x16xf32>
    %265 = arith.mulf %260, %264 : vector<4x16xf32>
    %266 = vector.broadcast %37 : vector<1x16xf32> to vector<4x16xf32>
    %267 = arith.mulf %265, %266 : vector<4x16xf32>
    %268 = vector.broadcast %38 : vector<1x16xf32> to vector<4x16xf32>
    %269 = arith.addf %267, %268 : vector<4x16xf32>
    %270 = math.tanh %269 : vector<4x16xf32>
    %271 = arith.mulf %244, %270 : vector<4x16xf32>
    %272 = vector.extract_strided_slice %271 {offsets = [0, 0], sizes = [2, 16], strides = [1, 1]} : vector<4x16xf32> to vector<2x16xf32>
    %273 = vector.shape_cast %272 : vector<2x16xf32> to vector<2x1x16xf32>
    %c0_91 = arith.constant 0 : index
    %274 = arith.index_cast %c2_i32 : i32 to index
    %c0_92 = arith.constant 0 : index
    %275 = vector.load %arg12[%c0_91, %274, %c0_92] : memref<2x8x32xf32, #tpu.memory_space<vmem>>, vector<2x1x16xf32>
    tpu.vector_store %arg12[%c0_91, %274, %c0_92], %273 {strides = array<i32>} : memref<2x8x32xf32, #tpu.memory_space<vmem>>, vector<2x1x16xf32>,
    %276 = vector.extract_strided_slice %271 {offsets = [2, 0], sizes = [2, 16], strides = [1, 1]} : vector<4x16xf32> to vector<2x16xf32>
    %277 = vector.shape_cast %276 : vector<2x16xf32> to vector<2x1x16xf32>
    %c7_i32_93 = arith.constant 7 : i32
    %278 = arith.subi %c7_i32_93, %c2_i32 : i32
    %c0_94 = arith.constant 0 : index
    %279 = arith.index_cast %278 : i32 to index
    %c16_95 = arith.constant 16 : index
    %280 = vector.load %arg12[%c0_94, %279, %c16_95] : memref<2x8x32xf32, #tpu.memory_space<vmem>>, vector<2x1x16xf32>
    tpu.vector_store %arg12[%c0_94, %279, %c16_95], %277 {strides = array<i32>} : memref<2x8x32xf32, #tpu.memory_space<vmem>>, vector<2x1x16xf32>,
    %c3_i32 = arith.constant 3 : i32
    %c0_96 = arith.constant 0 : index
    %281 = arith.index_cast %c3_i32 : i32 to index
    %c0_97 = arith.constant 0 : index
    %282 = vector.load %arg13[%c0_96, %281, %c0_97] : memref<2x8x64xf32, #tpu.memory_space<vmem>>, vector<2x1x64xf32>
    %283 = vector.shape_cast %282 : vector<2x1x64xf32> to vector<2x64xf32>
    %c7_i32_98 = arith.constant 7 : i32
    %284 = arith.subi %c7_i32_98, %c3_i32 : i32
    %c0_99 = arith.constant 0 : index
    %285 = arith.index_cast %284 : i32 to index
    %c0_100 = arith.constant 0 : index
    %286 = vector.load %arg13[%c0_99, %285, %c0_100] : memref<2x8x64xf32, #tpu.memory_space<vmem>>, vector<2x1x64xf32>
    %287 = vector.shape_cast %286 : vector<2x1x64xf32> to vector<2x64xf32>
    %288 = tpu.concatenate %283, %287 in 0 : vector<2x64xf32>, vector<2x64xf32> -> vector<4x64xf32>
    %cst_101 = arith.constant dense<0.000000e+00> : vector<4x64xf32>
    %289 = tpu.matmul %271, %33, %cst_101 {dimension_numbers = #tpu.dot_dimension_numbers<[1], [0], [0], [1], [0, 0, 1, 1], [], []>} : vector<4x16xf32>, vector<16x64xf32>, vector<4x64xf32> -> vector<4x64xf32>
    %290 = vector.broadcast %34 : vector<1x64xf32> to vector<4x64xf32>
    %291 = arith.addf %289, %290 : vector<4x64xf32>
    %cst_102 = arith.constant dense<0.000000e+00> : vector<4xf32>
    %292 = vector.multi_reduction <add>, %291, %cst_102 [1] : vector<4x64xf32> to vector<4xf32>
    %293 = vector.shape_cast %292 : vector<4xf32> to vector<4x1xf32>
    %cst_103 = arith.constant 6.400000e+01 : f32
    %294 = vector.broadcast %cst_103 : f32 to vector<4x1xf32>
    %295 = arith.divf %293, %294 : vector<4x1xf32>
    %296 = vector.broadcast %295 : vector<4x1xf32> to vector<4x64xf32>
    %297 = arith.subf %291, %296 : vector<4x64xf32>
    %298 = arith.mulf %297, %297 : vector<4x64xf32>
    %cst_104 = arith.constant dense<0.000000e+00> : vector<4xf32>
    %299 = vector.multi_reduction <add>, %298, %cst_104 [1] : vector<4x64xf32> to vector<4xf32>
    %300 = vector.shape_cast %299 : vector<4xf32> to vector<4x1xf32>
    %cst_105 = arith.constant 6.400000e+01 : f32
    %301 = vector.broadcast %cst_105 : f32 to vector<4x1xf32>
    %302 = arith.divf %300, %301 : vector<4x1xf32>
    %303 = vector.broadcast %295 : vector<4x1xf32> to vector<4x64xf32>
    %304 = arith.subf %291, %303 : vector<4x64xf32>
    %cst_106 = arith.constant 9.99999974E-6 : f32
    %305 = vector.broadcast %cst_106 : f32 to vector<4x1xf32>
    %306 = arith.addf %302, %305 : vector<4x1xf32>
    %307 = math.rsqrt %306 : vector<4x1xf32>
    %308 = vector.broadcast %307 : vector<4x1xf32> to vector<4x64xf32>
    %309 = arith.mulf %304, %308 : vector<4x64xf32>
    %310 = vector.broadcast %35 : vector<1x64xf32> to vector<4x64xf32>
    %311 = arith.mulf %309, %310 : vector<4x64xf32>
    %312 = vector.broadcast %36 : vector<1x64xf32> to vector<4x64xf32>
    %313 = arith.addf %311, %312 : vector<4x64xf32>
    %314 = arith.addf %288, %313 : vector<4x64xf32>
    %315 = arith.negf %314 : vector<4x64xf32>
    %316 = math.exp %315 : vector<4x64xf32>
    %cst_107 = arith.constant 1.000000e+00 : f32
    %317 = vector.broadcast %cst_107 : f32 to vector<4x64xf32>
    %318 = arith.addf %317, %316 : vector<4x64xf32>
    %319 = arith.divf %317, %318 : vector<4x64xf32>
    %320 = math.tanh %314 : vector<4x64xf32>
    %321 = vector.extract_strided_slice %319 {offsets = [0, 0], sizes = [4, 16], strides = [1, 1]} : vector<4x64xf32> to vector<4x16xf32>
    %322 = vector.extract_strided_slice %319 {offsets = [0, 16], sizes = [4, 16], strides = [1, 1]} : vector<4x64xf32> to vector<4x16xf32>
    %323 = vector.extract_strided_slice %320 {offsets = [0, 32], sizes = [4, 16], strides = [1, 1]} : vector<4x64xf32> to vector<4x16xf32>
    %324 = vector.extract_strided_slice %319 {offsets = [0, 48], sizes = [4, 16], strides = [1, 1]} : vector<4x64xf32> to vector<4x16xf32>
    %325 = arith.mulf %322, %247 : vector<4x16xf32>
    %326 = arith.mulf %321, %323 : vector<4x16xf32>
    %327 = arith.addf %325, %326 : vector<4x16xf32>
    %cst_108 = arith.constant dense<0.000000e+00> : vector<4xf32>
    %328 = vector.multi_reduction <add>, %327, %cst_108 [1] : vector<4x16xf32> to vector<4xf32>
    %329 = vector.shape_cast %328 : vector<4xf32> to vector<4x1xf32>
    %cst_109 = arith.constant 1.600000e+01 : f32
    %330 = vector.broadcast %cst_109 : f32 to vector<4x1xf32>
    %331 = arith.divf %329, %330 : vector<4x1xf32>
    %332 = vector.broadcast %331 : vector<4x1xf32> to vector<4x16xf32>
    %333 = arith.subf %327, %332 : vector<4x16xf32>
    %334 = arith.mulf %333, %333 : vector<4x16xf32>
    %cst_110 = arith.constant dense<0.000000e+00> : vector<4xf32>
    %335 = vector.multi_reduction <add>, %334, %cst_110 [1] : vector<4x16xf32> to vector<4xf32>
    %336 = vector.shape_cast %335 : vector<4xf32> to vector<4x1xf32>
    %cst_111 = arith.constant 1.600000e+01 : f32
    %337 = vector.broadcast %cst_111 : f32 to vector<4x1xf32>
    %338 = arith.divf %336, %337 : vector<4x1xf32>
    %339 = vector.broadcast %331 : vector<4x1xf32> to vector<4x16xf32>
    %340 = arith.subf %327, %339 : vector<4x16xf32>
    %cst_112 = arith.constant 9.99999974E-6 : f32
    %341 = vector.broadcast %cst_112 : f32 to vector<4x1xf32>
    %342 = arith.addf %338, %341 : vector<4x1xf32>
    %343 = math.rsqrt %342 : vector<4x1xf32>
    %344 = vector.broadcast %343 : vector<4x1xf32> to vector<4x16xf32>
    %345 = arith.mulf %340, %344 : vector<4x16xf32>
    %346 = vector.broadcast %37 : vector<1x16xf32> to vector<4x16xf32>
    %347 = arith.mulf %345, %346 : vector<4x16xf32>
    %348 = vector.broadcast %38 : vector<1x16xf32> to vector<4x16xf32>
    %349 = arith.addf %347, %348 : vector<4x16xf32>
    %350 = math.tanh %349 : vector<4x16xf32>
    %351 = arith.mulf %324, %350 : vector<4x16xf32>
    %352 = vector.extract_strided_slice %351 {offsets = [0, 0], sizes = [2, 16], strides = [1, 1]} : vector<4x16xf32> to vector<2x16xf32>
    %353 = vector.shape_cast %352 : vector<2x16xf32> to vector<2x1x16xf32>
    %c0_113 = arith.constant 0 : index
    %354 = arith.index_cast %c3_i32 : i32 to index
    %c0_114 = arith.constant 0 : index
    %355 = vector.load %arg12[%c0_113, %354, %c0_114] : memref<2x8x32xf32, #tpu.memory_space<vmem>>, vector<2x1x16xf32>
    tpu.vector_store %arg12[%c0_113, %354, %c0_114], %353 {strides = array<i32>} : memref<2x8x32xf32, #tpu.memory_space<vmem>>, vector<2x1x16xf32>,
    %356 = vector.extract_strided_slice %351 {offsets = [2, 0], sizes = [2, 16], strides = [1, 1]} : vector<4x16xf32> to vector<2x16xf32>
    %357 = vector.shape_cast %356 : vector<2x16xf32> to vector<2x1x16xf32>
    %c7_i32_115 = arith.constant 7 : i32
    %358 = arith.subi %c7_i32_115, %c3_i32 : i32
    %c0_116 = arith.constant 0 : index
    %359 = arith.index_cast %358 : i32 to index
    %c16_117 = arith.constant 16 : index
    %360 = vector.load %arg12[%c0_116, %359, %c16_117] : memref<2x8x32xf32, #tpu.memory_space<vmem>>, vector<2x1x16xf32>
    tpu.vector_store %arg12[%c0_116, %359, %c16_117], %357 {strides = array<i32>} : memref<2x8x32xf32, #tpu.memory_space<vmem>>, vector<2x1x16xf32>,
    %c4_i32 = arith.constant 4 : i32
    %c0_118 = arith.constant 0 : index
    %361 = arith.index_cast %c4_i32 : i32 to index
    %c0_119 = arith.constant 0 : index
    %362 = vector.load %arg13[%c0_118, %361, %c0_119] : memref<2x8x64xf32, #tpu.memory_space<vmem>>, vector<2x1x64xf32>
    %363 = vector.shape_cast %362 : vector<2x1x64xf32> to vector<2x64xf32>
    %c7_i32_120 = arith.constant 7 : i32
    %364 = arith.subi %c7_i32_120, %c4_i32 : i32
    %c0_121 = arith.constant 0 : index
    %365 = arith.index_cast %364 : i32 to index
    %c0_122 = arith.constant 0 : index
    %366 = vector.load %arg13[%c0_121, %365, %c0_122] : memref<2x8x64xf32, #tpu.memory_space<vmem>>, vector<2x1x64xf32>
    %367 = vector.shape_cast %366 : vector<2x1x64xf32> to vector<2x64xf32>
    %368 = tpu.concatenate %363, %367 in 0 : vector<2x64xf32>, vector<2x64xf32> -> vector<4x64xf32>
    %cst_123 = arith.constant dense<0.000000e+00> : vector<4x64xf32>
    %369 = tpu.matmul %351, %33, %cst_123 {dimension_numbers = #tpu.dot_dimension_numbers<[1], [0], [0], [1], [0, 0, 1, 1], [], []>} : vector<4x16xf32>, vector<16x64xf32>, vector<4x64xf32> -> vector<4x64xf32>
    %370 = vector.broadcast %34 : vector<1x64xf32> to vector<4x64xf32>
    %371 = arith.addf %369, %370 : vector<4x64xf32>
    %cst_124 = arith.constant dense<0.000000e+00> : vector<4xf32>
    %372 = vector.multi_reduction <add>, %371, %cst_124 [1] : vector<4x64xf32> to vector<4xf32>
    %373 = vector.shape_cast %372 : vector<4xf32> to vector<4x1xf32>
    %cst_125 = arith.constant 6.400000e+01 : f32
    %374 = vector.broadcast %cst_125 : f32 to vector<4x1xf32>
    %375 = arith.divf %373, %374 : vector<4x1xf32>
    %376 = vector.broadcast %375 : vector<4x1xf32> to vector<4x64xf32>
    %377 = arith.subf %371, %376 : vector<4x64xf32>
    %378 = arith.mulf %377, %377 : vector<4x64xf32>
    %cst_126 = arith.constant dense<0.000000e+00> : vector<4xf32>
    %379 = vector.multi_reduction <add>, %378, %cst_126 [1] : vector<4x64xf32> to vector<4xf32>
    %380 = vector.shape_cast %379 : vector<4xf32> to vector<4x1xf32>
    %cst_127 = arith.constant 6.400000e+01 : f32
    %381 = vector.broadcast %cst_127 : f32 to vector<4x1xf32>
    %382 = arith.divf %380, %381 : vector<4x1xf32>
    %383 = vector.broadcast %375 : vector<4x1xf32> to vector<4x64xf32>
    %384 = arith.subf %371, %383 : vector<4x64xf32>
    %cst_128 = arith.constant 9.99999974E-6 : f32
    %385 = vector.broadcast %cst_128 : f32 to vector<4x1xf32>
    %386 = arith.addf %382, %385 : vector<4x1xf32>
    %387 = math.rsqrt %386 : vector<4x1xf32>
    %388 = vector.broadcast %387 : vector<4x1xf32> to vector<4x64xf32>
    %389 = arith.mulf %384, %388 : vector<4x64xf32>
    %390 = vector.broadcast %35 : vector<1x64xf32> to vector<4x64xf32>
    %391 = arith.mulf %389, %390 : vector<4x64xf32>
    %392 = vector.broadcast %36 : vector<1x64xf32> to vector<4x64xf32>
    %393 = arith.addf %391, %392 : vector<4x64xf32>
    %394 = arith.addf %368, %393 : vector<4x64xf32>
    %395 = arith.negf %394 : vector<4x64xf32>
    %396 = math.exp %395 : vector<4x64xf32>
    %cst_129 = arith.constant 1.000000e+00 : f32
    %397 = vector.broadcast %cst_129 : f32 to vector<4x64xf32>
    %398 = arith.addf %397, %396 : vector<4x64xf32>
    %399 = arith.divf %397, %398 : vector<4x64xf32>
    %400 = math.tanh %394 : vector<4x64xf32>
    %401 = vector.extract_strided_slice %399 {offsets = [0, 0], sizes = [4, 16], strides = [1, 1]} : vector<4x64xf32> to vector<4x16xf32>
    %402 = vector.extract_strided_slice %399 {offsets = [0, 16], sizes = [4, 16], strides = [1, 1]} : vector<4x64xf32> to vector<4x16xf32>
    %403 = vector.extract_strided_slice %400 {offsets = [0, 32], sizes = [4, 16], strides = [1, 1]} : vector<4x64xf32> to vector<4x16xf32>
    %404 = vector.extract_strided_slice %399 {offsets = [0, 48], sizes = [4, 16], strides = [1, 1]} : vector<4x64xf32> to vector<4x16xf32>
    %405 = arith.mulf %402, %327 : vector<4x16xf32>
    %406 = arith.mulf %401, %403 : vector<4x16xf32>
    %407 = arith.addf %405, %406 : vector<4x16xf32>
    %cst_130 = arith.constant dense<0.000000e+00> : vector<4xf32>
    %408 = vector.multi_reduction <add>, %407, %cst_130 [1] : vector<4x16xf32> to vector<4xf32>
    %409 = vector.shape_cast %408 : vector<4xf32> to vector<4x1xf32>
    %cst_131 = arith.constant 1.600000e+01 : f32
    %410 = vector.broadcast %cst_131 : f32 to vector<4x1xf32>
    %411 = arith.divf %409, %410 : vector<4x1xf32>
    %412 = vector.broadcast %411 : vector<4x1xf32> to vector<4x16xf32>
    %413 = arith.subf %407, %412 : vector<4x16xf32>
    %414 = arith.mulf %413, %413 : vector<4x16xf32>
    %cst_132 = arith.constant dense<0.000000e+00> : vector<4xf32>
    %415 = vector.multi_reduction <add>, %414, %cst_132 [1] : vector<4x16xf32> to vector<4xf32>
    %416 = vector.shape_cast %415 : vector<4xf32> to vector<4x1xf32>
    %cst_133 = arith.constant 1.600000e+01 : f32
    %417 = vector.broadcast %cst_133 : f32 to vector<4x1xf32>
    %418 = arith.divf %416, %417 : vector<4x1xf32>
    %419 = vector.broadcast %411 : vector<4x1xf32> to vector<4x16xf32>
    %420 = arith.subf %407, %419 : vector<4x16xf32>
    %cst_134 = arith.constant 9.99999974E-6 : f32
    %421 = vector.broadcast %cst_134 : f32 to vector<4x1xf32>
    %422 = arith.addf %418, %421 : vector<4x1xf32>
    %423 = math.rsqrt %422 : vector<4x1xf32>
    %424 = vector.broadcast %423 : vector<4x1xf32> to vector<4x16xf32>
    %425 = arith.mulf %420, %424 : vector<4x16xf32>
    %426 = vector.broadcast %37 : vector<1x16xf32> to vector<4x16xf32>
    %427 = arith.mulf %425, %426 : vector<4x16xf32>
    %428 = vector.broadcast %38 : vector<1x16xf32> to vector<4x16xf32>
    %429 = arith.addf %427, %428 : vector<4x16xf32>
    %430 = math.tanh %429 : vector<4x16xf32>
    %431 = arith.mulf %404, %430 : vector<4x16xf32>
    %432 = vector.extract_strided_slice %431 {offsets = [0, 0], sizes = [2, 16], strides = [1, 1]} : vector<4x16xf32> to vector<2x16xf32>
    %433 = vector.shape_cast %432 : vector<2x16xf32> to vector<2x1x16xf32>
    %c0_135 = arith.constant 0 : index
    %434 = arith.index_cast %c4_i32 : i32 to index
    %c0_136 = arith.constant 0 : index
    %435 = vector.load %arg12[%c0_135, %434, %c0_136] : memref<2x8x32xf32, #tpu.memory_space<vmem>>, vector<2x1x16xf32>
    tpu.vector_store %arg12[%c0_135, %434, %c0_136], %433 {strides = array<i32>} : memref<2x8x32xf32, #tpu.memory_space<vmem>>, vector<2x1x16xf32>,
    %436 = vector.extract_strided_slice %431 {offsets = [2, 0], sizes = [2, 16], strides = [1, 1]} : vector<4x16xf32> to vector<2x16xf32>
    %437 = vector.shape_cast %436 : vector<2x16xf32> to vector<2x1x16xf32>
    %c7_i32_137 = arith.constant 7 : i32
    %438 = arith.subi %c7_i32_137, %c4_i32 : i32
    %c0_138 = arith.constant 0 : index
    %439 = arith.index_cast %438 : i32 to index
    %c16_139 = arith.constant 16 : index
    %440 = vector.load %arg12[%c0_138, %439, %c16_139] : memref<2x8x32xf32, #tpu.memory_space<vmem>>, vector<2x1x16xf32>
    tpu.vector_store %arg12[%c0_138, %439, %c16_139], %437 {strides = array<i32>} : memref<2x8x32xf32, #tpu.memory_space<vmem>>, vector<2x1x16xf32>,
    %c5_i32 = arith.constant 5 : i32
    %c0_140 = arith.constant 0 : index
    %441 = arith.index_cast %c5_i32 : i32 to index
    %c0_141 = arith.constant 0 : index
    %442 = vector.load %arg13[%c0_140, %441, %c0_141] : memref<2x8x64xf32, #tpu.memory_space<vmem>>, vector<2x1x64xf32>
    %443 = vector.shape_cast %442 : vector<2x1x64xf32> to vector<2x64xf32>
    %c7_i32_142 = arith.constant 7 : i32
    %444 = arith.subi %c7_i32_142, %c5_i32 : i32
    %c0_143 = arith.constant 0 : index
    %445 = arith.index_cast %444 : i32 to index
    %c0_144 = arith.constant 0 : index
    %446 = vector.load %arg13[%c0_143, %445, %c0_144] : memref<2x8x64xf32, #tpu.memory_space<vmem>>, vector<2x1x64xf32>
    %447 = vector.shape_cast %446 : vector<2x1x64xf32> to vector<2x64xf32>
    %448 = tpu.concatenate %443, %447 in 0 : vector<2x64xf32>, vector<2x64xf32> -> vector<4x64xf32>
    %cst_145 = arith.constant dense<0.000000e+00> : vector<4x64xf32>
    %449 = tpu.matmul %431, %33, %cst_145 {dimension_numbers = #tpu.dot_dimension_numbers<[1], [0], [0], [1], [0, 0, 1, 1], [], []>} : vector<4x16xf32>, vector<16x64xf32>, vector<4x64xf32> -> vector<4x64xf32>
    %450 = vector.broadcast %34 : vector<1x64xf32> to vector<4x64xf32>
    %451 = arith.addf %449, %450 : vector<4x64xf32>
    %cst_146 = arith.constant dense<0.000000e+00> : vector<4xf32>
    %452 = vector.multi_reduction <add>, %451, %cst_146 [1] : vector<4x64xf32> to vector<4xf32>
    %453 = vector.shape_cast %452 : vector<4xf32> to vector<4x1xf32>
    %cst_147 = arith.constant 6.400000e+01 : f32
    %454 = vector.broadcast %cst_147 : f32 to vector<4x1xf32>
    %455 = arith.divf %453, %454 : vector<4x1xf32>
    %456 = vector.broadcast %455 : vector<4x1xf32> to vector<4x64xf32>
    %457 = arith.subf %451, %456 : vector<4x64xf32>
    %458 = arith.mulf %457, %457 : vector<4x64xf32>
    %cst_148 = arith.constant dense<0.000000e+00> : vector<4xf32>
    %459 = vector.multi_reduction <add>, %458, %cst_148 [1] : vector<4x64xf32> to vector<4xf32>
    %460 = vector.shape_cast %459 : vector<4xf32> to vector<4x1xf32>
    %cst_149 = arith.constant 6.400000e+01 : f32
    %461 = vector.broadcast %cst_149 : f32 to vector<4x1xf32>
    %462 = arith.divf %460, %461 : vector<4x1xf32>
    %463 = vector.broadcast %455 : vector<4x1xf32> to vector<4x64xf32>
    %464 = arith.subf %451, %463 : vector<4x64xf32>
    %cst_150 = arith.constant 9.99999974E-6 : f32
    %465 = vector.broadcast %cst_150 : f32 to vector<4x1xf32>
    %466 = arith.addf %462, %465 : vector<4x1xf32>
    %467 = math.rsqrt %466 : vector<4x1xf32>
    %468 = vector.broadcast %467 : vector<4x1xf32> to vector<4x64xf32>
    %469 = arith.mulf %464, %468 : vector<4x64xf32>
    %470 = vector.broadcast %35 : vector<1x64xf32> to vector<4x64xf32>
    %471 = arith.mulf %469, %470 : vector<4x64xf32>
    %472 = vector.broadcast %36 : vector<1x64xf32> to vector<4x64xf32>
    %473 = arith.addf %471, %472 : vector<4x64xf32>
    %474 = arith.addf %448, %473 : vector<4x64xf32>
    %475 = arith.negf %474 : vector<4x64xf32>
    %476 = math.exp %475 : vector<4x64xf32>
    %cst_151 = arith.constant 1.000000e+00 : f32
    %477 = vector.broadcast %cst_151 : f32 to vector<4x64xf32>
    %478 = arith.addf %477, %476 : vector<4x64xf32>
    %479 = arith.divf %477, %478 : vector<4x64xf32>
    %480 = math.tanh %474 : vector<4x64xf32>
    %481 = vector.extract_strided_slice %479 {offsets = [0, 0], sizes = [4, 16], strides = [1, 1]} : vector<4x64xf32> to vector<4x16xf32>
    %482 = vector.extract_strided_slice %479 {offsets = [0, 16], sizes = [4, 16], strides = [1, 1]} : vector<4x64xf32> to vector<4x16xf32>
    %483 = vector.extract_strided_slice %480 {offsets = [0, 32], sizes = [4, 16], strides = [1, 1]} : vector<4x64xf32> to vector<4x16xf32>
    %484 = vector.extract_strided_slice %479 {offsets = [0, 48], sizes = [4, 16], strides = [1, 1]} : vector<4x64xf32> to vector<4x16xf32>
    %485 = arith.mulf %482, %407 : vector<4x16xf32>
    %486 = arith.mulf %481, %483 : vector<4x16xf32>
    %487 = arith.addf %485, %486 : vector<4x16xf32>
    %cst_152 = arith.constant dense<0.000000e+00> : vector<4xf32>
    %488 = vector.multi_reduction <add>, %487, %cst_152 [1] : vector<4x16xf32> to vector<4xf32>
    %489 = vector.shape_cast %488 : vector<4xf32> to vector<4x1xf32>
    %cst_153 = arith.constant 1.600000e+01 : f32
    %490 = vector.broadcast %cst_153 : f32 to vector<4x1xf32>
    %491 = arith.divf %489, %490 : vector<4x1xf32>
    %492 = vector.broadcast %491 : vector<4x1xf32> to vector<4x16xf32>
    %493 = arith.subf %487, %492 : vector<4x16xf32>
    %494 = arith.mulf %493, %493 : vector<4x16xf32>
    %cst_154 = arith.constant dense<0.000000e+00> : vector<4xf32>
    %495 = vector.multi_reduction <add>, %494, %cst_154 [1] : vector<4x16xf32> to vector<4xf32>
    %496 = vector.shape_cast %495 : vector<4xf32> to vector<4x1xf32>
    %cst_155 = arith.constant 1.600000e+01 : f32
    %497 = vector.broadcast %cst_155 : f32 to vector<4x1xf32>
    %498 = arith.divf %496, %497 : vector<4x1xf32>
    %499 = vector.broadcast %491 : vector<4x1xf32> to vector<4x16xf32>
    %500 = arith.subf %487, %499 : vector<4x16xf32>
    %cst_156 = arith.constant 9.99999974E-6 : f32
    %501 = vector.broadcast %cst_156 : f32 to vector<4x1xf32>
    %502 = arith.addf %498, %501 : vector<4x1xf32>
    %503 = math.rsqrt %502 : vector<4x1xf32>
    %504 = vector.broadcast %503 : vector<4x1xf32> to vector<4x16xf32>
    %505 = arith.mulf %500, %504 : vector<4x16xf32>
    %506 = vector.broadcast %37 : vector<1x16xf32> to vector<4x16xf32>
    %507 = arith.mulf %505, %506 : vector<4x16xf32>
    %508 = vector.broadcast %38 : vector<1x16xf32> to vector<4x16xf32>
    %509 = arith.addf %507, %508 : vector<4x16xf32>
    %510 = math.tanh %509 : vector<4x16xf32>
    %511 = arith.mulf %484, %510 : vector<4x16xf32>
    %512 = vector.extract_strided_slice %511 {offsets = [0, 0], sizes = [2, 16], strides = [1, 1]} : vector<4x16xf32> to vector<2x16xf32>
    %513 = vector.shape_cast %512 : vector<2x16xf32> to vector<2x1x16xf32>
    %c0_157 = arith.constant 0 : index
    %514 = arith.index_cast %c5_i32 : i32 to index
    %c0_158 = arith.constant 0 : index
    %515 = vector.load %arg12[%c0_157, %514, %c0_158] : memref<2x8x32xf32, #tpu.memory_space<vmem>>, vector<2x1x16xf32>
    tpu.vector_store %arg12[%c0_157, %514, %c0_158], %513 {strides = array<i32>} : memref<2x8x32xf32, #tpu.memory_space<vmem>>, vector<2x1x16xf32>,
    %516 = vector.extract_strided_slice %511 {offsets = [2, 0], sizes = [2, 16], strides = [1, 1]} : vector<4x16xf32> to vector<2x16xf32>
    %517 = vector.shape_cast %516 : vector<2x16xf32> to vector<2x1x16xf32>
    %c7_i32_159 = arith.constant 7 : i32
    %518 = arith.subi %c7_i32_159, %c5_i32 : i32
    %c0_160 = arith.constant 0 : index
    %519 = arith.index_cast %518 : i32 to index
    %c16_161 = arith.constant 16 : index
    %520 = vector.load %arg12[%c0_160, %519, %c16_161] : memref<2x8x32xf32, #tpu.memory_space<vmem>>, vector<2x1x16xf32>
    tpu.vector_store %arg12[%c0_160, %519, %c16_161], %517 {strides = array<i32>} : memref<2x8x32xf32, #tpu.memory_space<vmem>>, vector<2x1x16xf32>,
    %c6_i32 = arith.constant 6 : i32
    %c0_162 = arith.constant 0 : index
    %521 = arith.index_cast %c6_i32 : i32 to index
    %c0_163 = arith.constant 0 : index
    %522 = vector.load %arg13[%c0_162, %521, %c0_163] : memref<2x8x64xf32, #tpu.memory_space<vmem>>, vector<2x1x64xf32>
    %523 = vector.shape_cast %522 : vector<2x1x64xf32> to vector<2x64xf32>
    %c7_i32_164 = arith.constant 7 : i32
    %524 = arith.subi %c7_i32_164, %c6_i32 : i32
    %c0_165 = arith.constant 0 : index
    %525 = arith.index_cast %524 : i32 to index
    %c0_166 = arith.constant 0 : index
    %526 = vector.load %arg13[%c0_165, %525, %c0_166] : memref<2x8x64xf32, #tpu.memory_space<vmem>>, vector<2x1x64xf32>
    %527 = vector.shape_cast %526 : vector<2x1x64xf32> to vector<2x64xf32>
    %528 = tpu.concatenate %523, %527 in 0 : vector<2x64xf32>, vector<2x64xf32> -> vector<4x64xf32>
    %cst_167 = arith.constant dense<0.000000e+00> : vector<4x64xf32>
    %529 = tpu.matmul %511, %33, %cst_167 {dimension_numbers = #tpu.dot_dimension_numbers<[1], [0], [0], [1], [0, 0, 1, 1], [], []>} : vector<4x16xf32>, vector<16x64xf32>, vector<4x64xf32> -> vector<4x64xf32>
    %530 = vector.broadcast %34 : vector<1x64xf32> to vector<4x64xf32>
    %531 = arith.addf %529, %530 : vector<4x64xf32>
    %cst_168 = arith.constant dense<0.000000e+00> : vector<4xf32>
    %532 = vector.multi_reduction <add>, %531, %cst_168 [1] : vector<4x64xf32> to vector<4xf32>
    %533 = vector.shape_cast %532 : vector<4xf32> to vector<4x1xf32>
    %cst_169 = arith.constant 6.400000e+01 : f32
    %534 = vector.broadcast %cst_169 : f32 to vector<4x1xf32>
    %535 = arith.divf %533, %534 : vector<4x1xf32>
    %536 = vector.broadcast %535 : vector<4x1xf32> to vector<4x64xf32>
    %537 = arith.subf %531, %536 : vector<4x64xf32>
    %538 = arith.mulf %537, %537 : vector<4x64xf32>
    %cst_170 = arith.constant dense<0.000000e+00> : vector<4xf32>
    %539 = vector.multi_reduction <add>, %538, %cst_170 [1] : vector<4x64xf32> to vector<4xf32>
    %540 = vector.shape_cast %539 : vector<4xf32> to vector<4x1xf32>
    %cst_171 = arith.constant 6.400000e+01 : f32
    %541 = vector.broadcast %cst_171 : f32 to vector<4x1xf32>
    %542 = arith.divf %540, %541 : vector<4x1xf32>
    %543 = vector.broadcast %535 : vector<4x1xf32> to vector<4x64xf32>
    %544 = arith.subf %531, %543 : vector<4x64xf32>
    %cst_172 = arith.constant 9.99999974E-6 : f32
    %545 = vector.broadcast %cst_172 : f32 to vector<4x1xf32>
    %546 = arith.addf %542, %545 : vector<4x1xf32>
    %547 = math.rsqrt %546 : vector<4x1xf32>
    %548 = vector.broadcast %547 : vector<4x1xf32> to vector<4x64xf32>
    %549 = arith.mulf %544, %548 : vector<4x64xf32>
    %550 = vector.broadcast %35 : vector<1x64xf32> to vector<4x64xf32>
    %551 = arith.mulf %549, %550 : vector<4x64xf32>
    %552 = vector.broadcast %36 : vector<1x64xf32> to vector<4x64xf32>
    %553 = arith.addf %551, %552 : vector<4x64xf32>
    %554 = arith.addf %528, %553 : vector<4x64xf32>
    %555 = arith.negf %554 : vector<4x64xf32>
    %556 = math.exp %555 : vector<4x64xf32>
    %cst_173 = arith.constant 1.000000e+00 : f32
    %557 = vector.broadcast %cst_173 : f32 to vector<4x64xf32>
    %558 = arith.addf %557, %556 : vector<4x64xf32>
    %559 = arith.divf %557, %558 : vector<4x64xf32>
    %560 = math.tanh %554 : vector<4x64xf32>
    %561 = vector.extract_strided_slice %559 {offsets = [0, 0], sizes = [4, 16], strides = [1, 1]} : vector<4x64xf32> to vector<4x16xf32>
    %562 = vector.extract_strided_slice %559 {offsets = [0, 16], sizes = [4, 16], strides = [1, 1]} : vector<4x64xf32> to vector<4x16xf32>
    %563 = vector.extract_strided_slice %560 {offsets = [0, 32], sizes = [4, 16], strides = [1, 1]} : vector<4x64xf32> to vector<4x16xf32>
    %564 = vector.extract_strided_slice %559 {offsets = [0, 48], sizes = [4, 16], strides = [1, 1]} : vector<4x64xf32> to vector<4x16xf32>
    %565 = arith.mulf %562, %487 : vector<4x16xf32>
    %566 = arith.mulf %561, %563 : vector<4x16xf32>
    %567 = arith.addf %565, %566 : vector<4x16xf32>
    %cst_174 = arith.constant dense<0.000000e+00> : vector<4xf32>
    %568 = vector.multi_reduction <add>, %567, %cst_174 [1] : vector<4x16xf32> to vector<4xf32>
    %569 = vector.shape_cast %568 : vector<4xf32> to vector<4x1xf32>
    %cst_175 = arith.constant 1.600000e+01 : f32
    %570 = vector.broadcast %cst_175 : f32 to vector<4x1xf32>
    %571 = arith.divf %569, %570 : vector<4x1xf32>
    %572 = vector.broadcast %571 : vector<4x1xf32> to vector<4x16xf32>
    %573 = arith.subf %567, %572 : vector<4x16xf32>
    %574 = arith.mulf %573, %573 : vector<4x16xf32>
    %cst_176 = arith.constant dense<0.000000e+00> : vector<4xf32>
    %575 = vector.multi_reduction <add>, %574, %cst_176 [1] : vector<4x16xf32> to vector<4xf32>
    %576 = vector.shape_cast %575 : vector<4xf32> to vector<4x1xf32>
    %cst_177 = arith.constant 1.600000e+01 : f32
    %577 = vector.broadcast %cst_177 : f32 to vector<4x1xf32>
    %578 = arith.divf %576, %577 : vector<4x1xf32>
    %579 = vector.broadcast %571 : vector<4x1xf32> to vector<4x16xf32>
    %580 = arith.subf %567, %579 : vector<4x16xf32>
    %cst_178 = arith.constant 9.99999974E-6 : f32
    %581 = vector.broadcast %cst_178 : f32 to vector<4x1xf32>
    %582 = arith.addf %578, %581 : vector<4x1xf32>
    %583 = math.rsqrt %582 : vector<4x1xf32>
    %584 = vector.broadcast %583 : vector<4x1xf32> to vector<4x16xf32>
    %585 = arith.mulf %580, %584 : vector<4x16xf32>
    %586 = vector.broadcast %37 : vector<1x16xf32> to vector<4x16xf32>
    %587 = arith.mulf %585, %586 : vector<4x16xf32>
    %588 = vector.broadcast %38 : vector<1x16xf32> to vector<4x16xf32>
    %589 = arith.addf %587, %588 : vector<4x16xf32>
    %590 = math.tanh %589 : vector<4x16xf32>
    %591 = arith.mulf %564, %590 : vector<4x16xf32>
    %592 = vector.extract_strided_slice %591 {offsets = [0, 0], sizes = [2, 16], strides = [1, 1]} : vector<4x16xf32> to vector<2x16xf32>
    %593 = vector.shape_cast %592 : vector<2x16xf32> to vector<2x1x16xf32>
    %c0_179 = arith.constant 0 : index
    %594 = arith.index_cast %c6_i32 : i32 to index
    %c0_180 = arith.constant 0 : index
    %595 = vector.load %arg12[%c0_179, %594, %c0_180] : memref<2x8x32xf32, #tpu.memory_space<vmem>>, vector<2x1x16xf32>
    tpu.vector_store %arg12[%c0_179, %594, %c0_180], %593 {strides = array<i32>} : memref<2x8x32xf32, #tpu.memory_space<vmem>>, vector<2x1x16xf32>,
    %596 = vector.extract_strided_slice %591 {offsets = [2, 0], sizes = [2, 16], strides = [1, 1]} : vector<4x16xf32> to vector<2x16xf32>
    %597 = vector.shape_cast %596 : vector<2x16xf32> to vector<2x1x16xf32>
    %c7_i32_181 = arith.constant 7 : i32
    %598 = arith.subi %c7_i32_181, %c6_i32 : i32
    %c0_182 = arith.constant 0 : index
    %599 = arith.index_cast %598 : i32 to index
    %c16_183 = arith.constant 16 : index
    %600 = vector.load %arg12[%c0_182, %599, %c16_183] : memref<2x8x32xf32, #tpu.memory_space<vmem>>, vector<2x1x16xf32>
    tpu.vector_store %arg12[%c0_182, %599, %c16_183], %597 {strides = array<i32>} : memref<2x8x32xf32, #tpu.memory_space<vmem>>, vector<2x1x16xf32>,
    %c7_i32_184 = arith.constant 7 : i32
    %c0_185 = arith.constant 0 : index
    %601 = arith.index_cast %c7_i32_184 : i32 to index
    %c0_186 = arith.constant 0 : index
    %602 = vector.load %arg13[%c0_185, %601, %c0_186] : memref<2x8x64xf32, #tpu.memory_space<vmem>>, vector<2x1x64xf32>
    %603 = vector.shape_cast %602 : vector<2x1x64xf32> to vector<2x64xf32>
    %c7_i32_187 = arith.constant 7 : i32
    %604 = arith.subi %c7_i32_187, %c7_i32_184 : i32
    %c0_188 = arith.constant 0 : index
    %605 = arith.index_cast %604 : i32 to index
    %c0_189 = arith.constant 0 : index
    %606 = vector.load %arg13[%c0_188, %605, %c0_189] : memref<2x8x64xf32, #tpu.memory_space<vmem>>, vector<2x1x64xf32>
    %607 = vector.shape_cast %606 : vector<2x1x64xf32> to vector<2x64xf32>
    %608 = tpu.concatenate %603, %607 in 0 : vector<2x64xf32>, vector<2x64xf32> -> vector<4x64xf32>
    %cst_190 = arith.constant dense<0.000000e+00> : vector<4x64xf32>
    %609 = tpu.matmul %591, %33, %cst_190 {dimension_numbers = #tpu.dot_dimension_numbers<[1], [0], [0], [1], [0, 0, 1, 1], [], []>} : vector<4x16xf32>, vector<16x64xf32>, vector<4x64xf32> -> vector<4x64xf32>
    %610 = vector.broadcast %34 : vector<1x64xf32> to vector<4x64xf32>
    %611 = arith.addf %609, %610 : vector<4x64xf32>
    %cst_191 = arith.constant dense<0.000000e+00> : vector<4xf32>
    %612 = vector.multi_reduction <add>, %611, %cst_191 [1] : vector<4x64xf32> to vector<4xf32>
    %613 = vector.shape_cast %612 : vector<4xf32> to vector<4x1xf32>
    %cst_192 = arith.constant 6.400000e+01 : f32
    %614 = vector.broadcast %cst_192 : f32 to vector<4x1xf32>
    %615 = arith.divf %613, %614 : vector<4x1xf32>
    %616 = vector.broadcast %615 : vector<4x1xf32> to vector<4x64xf32>
    %617 = arith.subf %611, %616 : vector<4x64xf32>
    %618 = arith.mulf %617, %617 : vector<4x64xf32>
    %cst_193 = arith.constant dense<0.000000e+00> : vector<4xf32>
    %619 = vector.multi_reduction <add>, %618, %cst_193 [1] : vector<4x64xf32> to vector<4xf32>
    %620 = vector.shape_cast %619 : vector<4xf32> to vector<4x1xf32>
    %cst_194 = arith.constant 6.400000e+01 : f32
    %621 = vector.broadcast %cst_194 : f32 to vector<4x1xf32>
    %622 = arith.divf %620, %621 : vector<4x1xf32>
    %623 = vector.broadcast %615 : vector<4x1xf32> to vector<4x64xf32>
    %624 = arith.subf %611, %623 : vector<4x64xf32>
    %cst_195 = arith.constant 9.99999974E-6 : f32
    %625 = vector.broadcast %cst_195 : f32 to vector<4x1xf32>
    %626 = arith.addf %622, %625 : vector<4x1xf32>
    %627 = math.rsqrt %626 : vector<4x1xf32>
    %628 = vector.broadcast %627 : vector<4x1xf32> to vector<4x64xf32>
    %629 = arith.mulf %624, %628 : vector<4x64xf32>
    %630 = vector.broadcast %35 : vector<1x64xf32> to vector<4x64xf32>
    %631 = arith.mulf %629, %630 : vector<4x64xf32>
    %632 = vector.broadcast %36 : vector<1x64xf32> to vector<4x64xf32>
    %633 = arith.addf %631, %632 : vector<4x64xf32>
    %634 = arith.addf %608, %633 : vector<4x64xf32>
    %635 = arith.negf %634 : vector<4x64xf32>
    %636 = math.exp %635 : vector<4x64xf32>
    %cst_196 = arith.constant 1.000000e+00 : f32
    %637 = vector.broadcast %cst_196 : f32 to vector<4x64xf32>
    %638 = arith.addf %637, %636 : vector<4x64xf32>
    %639 = arith.divf %637, %638 : vector<4x64xf32>
    %640 = math.tanh %634 : vector<4x64xf32>
    %641 = vector.extract_strided_slice %639 {offsets = [0, 0], sizes = [4, 16], strides = [1, 1]} : vector<4x64xf32> to vector<4x16xf32>
    %642 = vector.extract_strided_slice %639 {offsets = [0, 16], sizes = [4, 16], strides = [1, 1]} : vector<4x64xf32> to vector<4x16xf32>
    %643 = vector.extract_strided_slice %640 {offsets = [0, 32], sizes = [4, 16], strides = [1, 1]} : vector<4x64xf32> to vector<4x16xf32>
    %644 = vector.extract_strided_slice %639 {offsets = [0, 48], sizes = [4, 16], strides = [1, 1]} : vector<4x64xf32> to vector<4x16xf32>
    %645 = arith.mulf %642, %567 : vector<4x16xf32>
    %646 = arith.mulf %641, %643 : vector<4x16xf32>
    %647 = arith.addf %645, %646 : vector<4x16xf32>
    %cst_197 = arith.constant dense<0.000000e+00> : vector<4xf32>
    %648 = vector.multi_reduction <add>, %647, %cst_197 [1] : vector<4x16xf32> to vector<4xf32>
    %649 = vector.shape_cast %648 : vector<4xf32> to vector<4x1xf32>
    %cst_198 = arith.constant 1.600000e+01 : f32
    %650 = vector.broadcast %cst_198 : f32 to vector<4x1xf32>
    %651 = arith.divf %649, %650 : vector<4x1xf32>
    %652 = vector.broadcast %651 : vector<4x1xf32> to vector<4x16xf32>
    %653 = arith.subf %647, %652 : vector<4x16xf32>
    %654 = arith.mulf %653, %653 : vector<4x16xf32>
    %cst_199 = arith.constant dense<0.000000e+00> : vector<4xf32>
    %655 = vector.multi_reduction <add>, %654, %cst_199 [1] : vector<4x16xf32> to vector<4xf32>
    %656 = vector.shape_cast %655 : vector<4xf32> to vector<4x1xf32>
    %cst_200 = arith.constant 1.600000e+01 : f32
    %657 = vector.broadcast %cst_200 : f32 to vector<4x1xf32>
    %658 = arith.divf %656, %657 : vector<4x1xf32>
    %659 = vector.broadcast %651 : vector<4x1xf32> to vector<4x16xf32>
    %660 = arith.subf %647, %659 : vector<4x16xf32>
    %cst_201 = arith.constant 9.99999974E-6 : f32
    %661 = vector.broadcast %cst_201 : f32 to vector<4x1xf32>
    %662 = arith.addf %658, %661 : vector<4x1xf32>
    %663 = math.rsqrt %662 : vector<4x1xf32>
    %664 = vector.broadcast %663 : vector<4x1xf32> to vector<4x16xf32>
    %665 = arith.mulf %660, %664 : vector<4x16xf32>
    %666 = vector.broadcast %37 : vector<1x16xf32> to vector<4x16xf32>
    %667 = arith.mulf %665, %666 : vector<4x16xf32>
    %668 = vector.broadcast %38 : vector<1x16xf32> to vector<4x16xf32>
    %669 = arith.addf %667, %668 : vector<4x16xf32>
    %670 = math.tanh %669 : vector<4x16xf32>
    %671 = arith.mulf %644, %670 : vector<4x16xf32>
    %672 = vector.extract_strided_slice %671 {offsets = [0, 0], sizes = [2, 16], strides = [1, 1]} : vector<4x16xf32> to vector<2x16xf32>
    %673 = vector.shape_cast %672 : vector<2x16xf32> to vector<2x1x16xf32>
    %c0_202 = arith.constant 0 : index
    %674 = arith.index_cast %c7_i32_184 : i32 to index
    %c0_203 = arith.constant 0 : index
    %675 = vector.load %arg12[%c0_202, %674, %c0_203] : memref<2x8x32xf32, #tpu.memory_space<vmem>>, vector<2x1x16xf32>
    tpu.vector_store %arg12[%c0_202, %674, %c0_203], %673 {strides = array<i32>} : memref<2x8x32xf32, #tpu.memory_space<vmem>>, vector<2x1x16xf32>,
    %676 = vector.extract_strided_slice %671 {offsets = [2, 0], sizes = [2, 16], strides = [1, 1]} : vector<4x16xf32> to vector<2x16xf32>
    %677 = vector.shape_cast %676 : vector<2x16xf32> to vector<2x1x16xf32>
    %c7_i32_204 = arith.constant 7 : i32
    %678 = arith.subi %c7_i32_204, %c7_i32_184 : i32
    %c0_205 = arith.constant 0 : index
    %679 = arith.index_cast %678 : i32 to index
    %c16_206 = arith.constant 16 : index
    %680 = vector.load %arg12[%c0_205, %679, %c16_206] : memref<2x8x32xf32, #tpu.memory_space<vmem>>, vector<2x1x16xf32>
    tpu.vector_store %arg12[%c0_205, %679, %c16_206], %677 {strides = array<i32>} : memref<2x8x32xf32, #tpu.memory_space<vmem>>, vector<2x1x16xf32>,
    %c8_i32 = arith.constant 8 : i32
    return
  }
  func.func @transform_0(%arg0: i32) -> (i32, i32, i32) {
    %c0_i32 = arith.constant 0 : i32
    %c0_i32_0 = arith.constant 0 : i32
    %c0_i32_1 = arith.constant 0 : i32
    return %arg0, %c0_i32, %c0_i32_0 : i32, i32, i32
  }
  func.func @transform_1(%arg0: i32) -> (i32, i32) {
    %c0_i32 = arith.constant 0 : i32
    %c0_i32_0 = arith.constant 0 : i32
    %c0_i32_1 = arith.constant 0 : i32
    return %c0_i32, %c0_i32_0 : i32, i32
  }
  func.func @transform_2(%arg0: i32) -> (i32, i32) {
    %c0_i32 = arith.constant 0 : i32
    %c0_i32_0 = arith.constant 0 : i32
    %c0_i32_1 = arith.constant 0 : i32
    return %c0_i32, %c0_i32_0 : i32, i32
  }
  func.func @transform_3(%arg0: i32) -> (i32, i32) {
    %c0_i32 = arith.constant 0 : i32
    %c0_i32_0 = arith.constant 0 : i32
    %c0_i32_1 = arith.constant 0 : i32
    return %c0_i32, %c0_i32_0 : i32, i32
  }
  func.func @transform_4(%arg0: i32) -> (i32, i32) {
    %c0_i32 = arith.constant 0 : i32
    %c0_i32_0 = arith.constant 0 : i32
    %c0_i32_1 = arith.constant 0 : i32
    return %c0_i32, %c0_i32_0 : i32, i32
  }
  func.func @transform_5(%arg0: i32) -> (i32, i32) {
    %c0_i32 = arith.constant 0 : i32
    %c0_i32_0 = arith.constant 0 : i32
    %c0_i32_1 = arith.constant 0 : i32
    return %c0_i32, %c0_i32_0 : i32, i32
  }
  func.func @transform_6(%arg0: i32) -> (i32, i32) {
    %c0_i32 = arith.constant 0 : i32
    %c0_i32_0 = arith.constant 0 : i32
    %c0_i32_1 = arith.constant 0 : i32
    return %c0_i32, %c0_i32_0 : i32, i32
  }
  func.func @transform_7(%arg0: i32) -> (i32, i32) {
    %c0_i32 = arith.constant 0 : i32
    %c0_i32_0 = arith.constant 0 : i32
    %c0_i32_1 = arith.constant 0 : i32
    return %c0_i32, %c0_i32_0 : i32, i32
  }
  func.func @transform_8(%arg0: i32) -> (i32, i32) {
    %c0_i32 = arith.constant 0 : i32
    %c0_i32_0 = arith.constant 0 : i32
    %c0_i32_1 = arith.constant 0 : i32
    return %c0_i32, %c0_i32_0 : i32, i32
  }
  func.func @transform_9(%arg0: i32) -> (i32, i32) {
    %c0_i32 = arith.constant 0 : i32
    %c0_i32_0 = arith.constant 0 : i32
    %c0_i32_1 = arith.constant 0 : i32
    return %c0_i32, %c0_i32_0 : i32, i32
  }
  func.func @transform_10(%arg0: i32) -> (i32, i32) {
    %c0_i32 = arith.constant 0 : i32
    %c0_i32_0 = arith.constant 0 : i32
    %c0_i32_1 = arith.constant 0 : i32
    return %c0_i32, %c0_i32_0 : i32, i32
  }
  func.func @transform_11(%arg0: i32) -> (i32, i32, i32) {
    %c0_i32 = arith.constant 0 : i32
    %c0_i32_0 = arith.constant 0 : i32
    %c0_i32_1 = arith.constant 0 : i32
    return %arg0, %c0_i32, %c0_i32_0 : i32, i32, i32
  }
}

</mosaic_0001>

<llo_original>
// kernel: tpu_custom_call.1
$region0: #{tpu_custom_call.1}
  #allocation0 [shape = 'u32[]', space=smem, size = 0x4, offset = 0x4, fixed_abs, tag = 'smem constant byte address 0x4 - core index']
  #allocation1 [shape = 'u32[144,128]{1,0:T(1,128)}', space=vmem, size = 0x12000, scoped, tag = 'internal scratch']
  #allocation2 [shape = 'f32[2,8,64]{2,1,0:T(8,128)}', space=vmem, size = 0x2000, scoped, tag = 'scratch operand']
  %s0 = inlined_call_operand.hbm [shape: f32[2,8,32], index: 0, kind: input, shape index: {}]
  %s1 = inlined_call_operand.hbm [shape: f32[32,64], index: 1, kind: input, shape index: {}]
  %s2 = inlined_call_operand.vmem [shape: f32[1,64], index: 2, kind: input, shape index: {}]
  %s3 = inlined_call_operand.hbm [shape: f32[16,64], index: 3, kind: input, shape index: {}]
  %s4 = inlined_call_operand.vmem [shape: f32[1,64], index: 4, kind: input, shape index: {}]
  %s5 = inlined_call_operand.vmem [shape: f32[1,64], index: 5, kind: input, shape index: {}]
  %s6 = inlined_call_operand.vmem [shape: f32[1,64], index: 6, kind: input, shape index: {}]
  %s7 = inlined_call_operand.vmem [shape: f32[1,64], index: 7, kind: input, shape index: {}]
  %s8 = inlined_call_operand.vmem [shape: f32[1,64], index: 8, kind: input, shape index: {}]
  %s9 = inlined_call_operand.vmem [shape: f32[1,16], index: 9, kind: input, shape index: {}]
  %s10 = inlined_call_operand.vmem [shape: f32[1,16], index: 10, kind: input, shape index: {}]
  %s11 = inlined_call_operand.hbm [shape: f32[2,8,32], index: 11, kind: output, shape index: {}]
  %s12 = sld [smem:[#allocation0]]
  $region66: #{tpu_custom_call.1} parent=0
    _
  %s14 = ssub.s32 1, %s12
  %s15 = scalar_select 0, %s14, %s12
  $region1: #{tpu_custom_call.1} parent=0
    #allocation3 [shape = 'u8[8192]{0}', space=vmem, size = 0x2000, scoped, tag = 'input window, operand 0, single buffered']
    #allocation4 [shape = 's32[1]{0}', space=sflag, size = 0x4, scoped, tag = 'scoped memory for tpu_custom_call.1']
    #allocation5 [shape = 's32[1]{0}', space=sflag, size = 0x4, scoped, tag = 'scoped memory for tpu_custom_call.1']
    #allocation6 [shape = 'u8[16384]{0}', space=vmem, size = 0x4000, scoped, tag = 'input window, operand 1, single buffered']
    #allocation7 [shape = 's32[1]{0}', space=sflag, size = 0x4, scoped, tag = 'scoped memory for tpu_custom_call.1']
    #allocation8 [shape = 'u8[8192]{0}', space=vmem, size = 0x2000, scoped, tag = 'input window, operand 3, single buffered']
    #allocation9 [shape = 'u8[8192]{0}', space=vmem, size = 0x2000, scoped, tag = 'output window, operand 0, single buffered']
    %16 = vsyncpa [#allocation4], 0
    %17 = vsyncpa [#allocation7], 0
    %18 = vsyncpa [#allocation5], 0
    // Predicated region
    $region2: #{tpu_custom_call.1} parent=1 // pred_check
      _
    $region3: #{tpu_custom_call.1} parent=1 // pred_check_branch
      %20 = sbr.rel (0) target = $region5
    $region4: #{tpu_custom_call.1} parent=1 // pred_region
      %s22 = ssub.s32 256, 256
      %23 = vsyncadd [#allocation4], %s22
      %s24 = sshll.u32 [#allocation3], 4
      %s25 = int_to_ptr.vmem [resolvable:$true] %s24
      %30 = dma.hbm_to_vmem [thread:$0]  %s0, 256, %s25, [#allocation4], 128, 128, 8
    $region5: #{tpu_custom_call.1} parent=1 // pred_fallthru
      _
    // Predicated region
    $region6: #{tpu_custom_call.1} parent=1 // pred_check
      _
    $region7: #{tpu_custom_call.1} parent=1 // pred_check_branch
      %32 = sbr.rel (0) target = $region9
    $region8: #{tpu_custom_call.1} parent=1 // pred_region
      %s34 = ssub.s32 512, 512
      %35 = vsyncadd [#allocation7], %s34
      %s36 = sshll.u32 [#allocation6], 4
      %s37 = int_to_ptr.vmem [resolvable:$true] %s36
      %42 = dma.hbm_to_vmem [thread:$0]  %s1, 512, %s37, [#allocation7], 128, 128, 8
    $region9: #{tpu_custom_call.1} parent=1 // pred_fallthru
      _
    // Predicated region
    $region10: #{tpu_custom_call.1} parent=1 // pred_check
      _
    $region11: #{tpu_custom_call.1} parent=1 // pred_check_branch
      %44 = sbr.rel (0) target = $region13
    $region12: #{tpu_custom_call.1} parent=1 // pred_region
      _
    $region13: #{tpu_custom_call.1} parent=1 // pred_fallthru
      _
    // Predicated region
    $region14: #{tpu_custom_call.1} parent=1 // pred_check
      _
    $region15: #{tpu_custom_call.1} parent=1 // pred_check_branch
      %46 = sbr.rel (0) target = $region17
    $region16: #{tpu_custom_call.1} parent=1 // pred_region
      %s48 = ssub.s32 256, 256
      %49 = vsyncadd [#allocation7], %s48
      %s50 = sshll.u32 [#allocation8], 4
      %s51 = int_to_ptr.vmem [resolvable:$true] %s50
      %56 = dma.hbm_to_vmem [thread:$0]  %s3, 256, %s51, [#allocation7], 128, 128, 8
    $region17: #{tpu_custom_call.1} parent=1 // pred_fallthru
      _
    // Predicated region
    $region18: #{tpu_custom_call.1} parent=1 // pred_check
      _
    $region19: #{tpu_custom_call.1} parent=1 // pred_check_branch
      %58 = sbr.rel (0) target = $region21
    $region20: #{tpu_custom_call.1} parent=1 // pred_region
      _
    $region21: #{tpu_custom_call.1} parent=1 // pred_fallthru
      _
    // Predicated region
    $region22: #{tpu_custom_call.1} parent=1 // pred_check
      _
    $region23: #{tpu_custom_call.1} parent=1 // pred_check_branch
      %60 = sbr.rel (0) target = $region25
    $region24: #{tpu_custom_call.1} parent=1 // pred_region
      _
    $region25: #{tpu_custom_call.1} parent=1 // pred_fallthru
      _
    // Predicated region
    $region26: #{tpu_custom_call.1} parent=1 // pred_check
      _
    $region27: #{tpu_custom_call.1} parent=1 // pred_check_branch
      %62 = sbr.rel (0) target = $region29
    $region28: #{tpu_custom_call.1} parent=1 // pred_region
      _
    $region29: #{tpu_custom_call.1} parent=1 // pred_fallthru
      _
    // Predicated region
    $region30: #{tpu_custom_call.1} parent=1 // pred_check
      _
    $region31: #{tpu_custom_call.1} parent=1 // pred_check_branch
      %64 = sbr.rel (0) target = $region33
    $region32: #{tpu_custom_call.1} parent=1 // pred_region
      _
    $region33: #{tpu_custom_call.1} parent=1 // pred_fallthru
      _
    // Predicated region
    $region34: #{tpu_custom_call.1} parent=1 // pred_check
      _
    $region35: #{tpu_custom_call.1} parent=1 // pred_check_branch
      %66 = sbr.rel (0) target = $region37
    $region36: #{tpu_custom_call.1} parent=1 // pred_region
      _
    $region37: #{tpu_custom_call.1} parent=1 // pred_fallthru
      _
    // Predicated region
    $region38: #{tpu_custom_call.1} parent=1 // pred_check
      _
    $region39: #{tpu_custom_call.1} parent=1 // pred_check_branch
      %68 = sbr.rel (0) target = $region41
    $region40: #{tpu_custom_call.1} parent=1 // pred_region
      _
    $region41: #{tpu_custom_call.1} parent=1 // pred_fallthru
      _
    // Predicated region
    $region42: #{tpu_custom_call.1} parent=1 // pred_check
      _
    $region43: #{tpu_custom_call.1} parent=1 // pred_check_branch
      %70 = sbr.rel (0) target = $region45
    $region44: #{tpu_custom_call.1} parent=1 // pred_region
      _
    $region45: #{tpu_custom_call.1} parent=1 // pred_fallthru
      _
    // Predicated region
    $region46: #{tpu_custom_call.1} parent=1 // pred_check
      _
    $region47: #{tpu_custom_call.1} parent=1 // pred_check_branch
      %72 = sbr.rel (0) target = $region49
    $region48: #{tpu_custom_call.1} parent=1 // pred_region
      %73 = dma.done [#allocation4], 256
    $region49: #{tpu_custom_call.1} parent=1 // pred_fallthru
      _
    // Predicated region
    $region50: #{tpu_custom_call.1} parent=1 // pred_check
      _
    $region51: #{tpu_custom_call.1} parent=1 // pred_check_branch
      %75 = sbr.rel (0) target = $region53
    $region52: #{tpu_custom_call.1} parent=1 // pred_region
      %76 = dma.done [#allocation7], 512
    $region53: #{tpu_custom_call.1} parent=1 // pred_fallthru
      _
    // Predicated region
    $region54: #{tpu_custom_call.1} parent=1 // pred_check
      _
    $region55: #{tpu_custom_call.1} parent=1 // pred_check_branch
      %78 = sbr.rel (0) target = $region57
    $region56: #{tpu_custom_call.1} parent=1 // pred_region
      %79 = dma.done [#allocation7], 256
    $region57: #{tpu_custom_call.1} parent=1 // pred_fallthru
      _
    %v80 = vld [vmem:[#allocation3] sm:$0xff]
    %v81 = vld [vmem:[#allocation3 + $0x8] sm:$0xff]
    %v82 = vld [vmem:[#allocation6] sm:$0xff]
    %v83 = vld [vmem:[#allocation6 + $0x8] sm:$0xff]
    %v84 = vld [vmem:[#allocation6 + $0x10] sm:$0xff]
    %v85 = vld [vmem:[#allocation6 + $0x18] sm:$0xff]
    %v86 = vld [vmem:[%s2] sm:$0x1]
    %v88 = vlaneseq
    %v89 = vshrl.u32 %v88, 7
    %v90 = vsub.s32 0, %v89
    %v91 = vrot.slane %v86, %v90
    %vm93 = vcmask 261120
    %v95 = vsel %vm93, %v80, 0
    %v98 = vsel %vm93, %v81, 0
    %100 = vmatprep.subr.mxu0 0.0
    %101 = vmatpush1.msra.mxu0 %v82
    %102 = vmatprep.subr.mxu0 0.0
    %103 = vmatpush1.msra.mxu0 %v83
    %104 = vmatprep.subr.mxu0 0.0
    %105 = vmatpush1.msra.mxu0 %v84
    %106 = vmatprep.subr.mxu0 0.0
    %107 = vmatpush1.msra.mxu0 %v85
    %108 = vmatprep.subr.mxu0 0.0
    %109 = vmatpush1.msra.mxu0 0.0
    %110 = vmatprep.subr.mxu0 0.0
    %111 = vmatpush1.msra.mxu0 0.0
    %112 = vmatprep.subr.mxu0 0.0
    %113 = vmatpush1.msra.mxu0 0.0
    %114 = vmatprep.subr.mxu0 0.0
    %115 = vmatpush1.msra.mxu0 0.0
    %116 = vmatprep.subr.mxu0 0.0
    %117 = vmatpush1.msra.mxu0 0.0
    %118 = vmatprep.subr.mxu0 0.0
    %119 = vmatpush1.msra.mxu0 0.0
    %120 = vmatprep.subr.mxu0 0.0
    %121 = vmatpush1.msra.mxu0 0.0
    %122 = vmatprep.subr.mxu0 0.0
    %123 = vmatpush1.msra.mxu0 0.0
    %124 = vmatprep.subr.mxu0 0.0
    %125 = vmatpush1.msra.mxu0 0.0
    %126 = vmatprep.subr.mxu0 0.0
    %127 = vmatpush1.msra.mxu0 0.0
    %128 = vmatprep.subr.mxu0 0.0
    %129 = vmatpush1.msra.mxu0 0.0
    %130 = vmatprep.subr.mxu0 0.0
    %131 = vmatpush1.msra.mxu0 0.0
    %132 = vmatprep.subr.mxu0 0.0
    %133 = vmatpush1.msra.mxu0 0.0
    %134 = vmatprep.subr.mxu0 0.0
    %135 = vmatpush1.msra.mxu0 0.0
    %136 = vmatprep.subr.mxu0 0.0
    %137 = vmatpush1.msra.mxu0 0.0
    %138 = vmatprep.subr.mxu0 0.0
    %139 = vmatpush1.msra.mxu0 0.0
    %140 = vmatprep.subr.mxu0 0.0
    %141 = vmatpush1.msra.mxu0 0.0
    %142 = vmatprep.subr.mxu0 0.0
    %143 = vmatpush1.msra.mxu0 0.0
    %144 = vmatprep.subr.mxu0 0.0
    %145 = vmatpush1.msra.mxu0 0.0
    %146 = vmatprep.subr.mxu0 0.0
    %147 = vmatpush1.msra.mxu0 0.0
    %148 = vmatprep.subr.mxu0 0.0
    %149 = vmatpush1.msra.mxu0 0.0
    %150 = vmatprep.subr.mxu0 0.0
    %151 = vmatpush1.msra.mxu0 0.0
    %152 = vmatprep.subr.mxu0 0.0
    %153 = vmatpush1.msra.mxu0 0.0
    %154 = vmatprep.subr.mxu0 0.0
    %155 = vmatpush1.msra.mxu0 0.0
    %156 = vmatprep.subr.mxu0 0.0
    %157 = vmatpush1.msra.mxu0 0.0
    %158 = vmatprep.subr.mxu0 0.0
    %159 = vmatpush1.msra.mxu0 0.0
    %160 = vmatprep.subr.mxu0 0.0
    %161 = vmatpush1.msra.mxu0 0.0
    %162 = vmatprep.subr.mxu0 0.0
    %163 = vmatpush1.msra.mxu0 0.0
    %164 = vmatprep.mubr.f32.mxu0 0.0
    %165 = vmatmul.mubr.f32.gmra.mrb[0].mxu0 %v95
    %v166 = vpop.f32.mrb[0].mxu0
    %v167 = vadd.f32 %v91, %v166
    %v168 = vpop.f32.mrb[0].mxu0
    %169 = vmatprep.mubr.f32.mxu0 0.0
    %170 = vmatmul.mubr.f32.gmra.mrb[0].mxu0 %v98
    %v171 = vpop.f32.mrb[0].mxu0
    %v172 = vadd.f32 %v91, %v171
    %v173 = vpop.f32.mrb[0].mxu0
    %174 = vdwg.mxu0
    %v175 = vld [vmem:[%s5] sm:$0x1]
    %v176 = vld [vmem:[%s6] sm:$0x1]
    %vm177 = vcmask 523264
    %v178 = vsel %vm177, %v167, 0.0
    %179 = vadd.xlane.f32.xlu0 %v178
    %v180 = vpop.xlane.xlu0 %179
    %v181 = vsel %vm177, %v172, 0.0
    %182 = vadd.xlane.f32.xlu0 %v181
    %v183 = vpop.xlane.xlu0 %182
    %v184 = vrcp.pop 64.0
    %v185 = vmul.f32 %v180, %v184
    %v186 = vmul.f32 %v183, %v184
    %v187 = vsub.f32 %v167, %v185
    %v188 = vsub.f32 %v172, %v186
    %v189 = vmul.f32 %v187, %v187
    %v190 = vmul.f32 %v188, %v188
    %v191 = vsel %vm177, %v189, 0.0
    %192 = vadd.xlane.f32.xlu0 %v191
    %v193 = vpop.xlane.xlu0 %192
    %v194 = vsel %vm177, %v190, 0.0
    %195 = vadd.xlane.f32.xlu0 %v194
    %v196 = vpop.xlane.xlu0 %195
    %v197 = vmul.f32 %v193, %v184
    %v198 = vmul.f32 %v196, %v184
    %v199 = vadd.f32 %v197, 1e-05
    %v200 = vadd.f32 %v198, 1e-05
    %v201 = vrsqrt.pop %v199
    %v202 = vrsqrt.pop %v200
    %v203 = vmul.f32 %v187, %v201
    %v204 = vmul.f32 %v188, %v202
    %v206 = vlaneseq
    %v207 = vshrl.u32 %v206, 7
    %v208 = vsub.s32 0, %v207
    %v209 = vrot.slane %v175, %v208
    %v211 = vmul.f32 %v203, %v209
    %v212 = vmul.f32 %v204, %v209
    %v214 = vlaneseq
    %v215 = vshrl.u32 %v214, 7
    %v216 = vsub.s32 0, %v215
    %v217 = vrot.slane %v176, %v216
    %v219 = vadd.f32 %v211, %v217
    %v220 = vadd.f32 %v212, %v217
    %221 = vst.msk [vmem:[#allocation2] sm:$0xff] %vm177, %v219
    %222 = vst.msk [vmem:[#allocation2 + $0x8] sm:$0xff] %vm177, %v220
    %v223 = vld [vmem:[#allocation8] sm:$0xff]
    %v224 = vld [vmem:[#allocation8 + $0x8] sm:$0xff]
    %v225 = vld [vmem:[%s4] sm:$0x1]
    %v226 = vld [vmem:[%s7] sm:$0x1]
    %v227 = vld [vmem:[%s8] sm:$0x1]
    %v228 = vld [vmem:[%s9] sm:$0x1]
    %v229 = vld [vmem:[%s10] sm:$0x1]
    %v230 = vld [vmem:[#allocation2] sm:$0x1]
    %v231 = vld [vmem:[#allocation2 + $0x8] sm:$0x1]
    %v232 = vld [vmem:[#allocation2 + $0x7] sm:$0x1]
    %v233 = vld [vmem:[#allocation2 + $0xf] sm:$0x1]
    %v236 = vrot.slane %v231, 7
    %vm237 = vcmask 1041409
    %v238 = vsel %vm237, %v236, %v230
    %v242 = vrot.slane %v232, 6
    %v243 = vrot.slane %v233, 5
    %vm244 = vcmask 1043459
    %v245 = vsel %vm244, %v243, %v242
    %vm247 = vcmask 1041408
    %v248 = vsel %vm247, %v238, %v245
    %v250 = vlaneseq
    %v251 = vshrl.u32 %v250, 7
    %v252 = vsub.s32 0, %v251
    %v253 = vrot.slane %v225, %v252
    %vm255 = vcmask 130048
    %v257 = vsel %vm255, 0.0, 0
    %259 = vmatprep.subr.mxu0 0.0
    %260 = vmatpush1.msra.mxu0 %v223
    %261 = vmatprep.subr.mxu0 0.0
    %262 = vmatpush1.msra.mxu0 %v224
    %263 = vmatprep.subr.mxu0 0.0
    %264 = vmatpush1.msra.mxu0 0.0
    %265 = vmatprep.subr.mxu0 0.0
    %266 = vmatpush1.msra.mxu0 0.0
    %267 = vmatprep.subr.mxu0 0.0
    %268 = vmatpush1.msra.mxu0 0.0
    %269 = vmatprep.subr.mxu0 0.0
    %270 = vmatpush1.msra.mxu0 0.0
    %271 = vmatprep.subr.mxu0 0.0
    %272 = vmatpush1.msra.mxu0 0.0
    %273 = vmatprep.subr.mxu0 0.0
    %274 = vmatpush1.msra.mxu0 0.0
    %275 = vmatprep.subr.mxu0 0.0
    %276 = vmatpush1.msra.mxu0 0.0
    %277 = vmatprep.subr.mxu0 0.0
    %278 = vmatpush1.msra.mxu0 0.0
    %279 = vmatprep.subr.mxu0 0.0
    %280 = vmatpush1.msra.mxu0 0.0
    %281 = vmatprep.subr.mxu0 0.0
    %282 = vmatpush1.msra.mxu0 0.0
    %283 = vmatprep.subr.mxu0 0.0
    %284 = vmatpush1.msra.mxu0 0.0
    %285 = vmatprep.subr.mxu0 0.0
    %286 = vmatpush1.msra.mxu0 0.0
    %287 = vmatprep.subr.mxu0 0.0
    %288 = vmatpush1.msra.mxu0 0.0
    %289 = vmatprep.subr.mxu0 0.0
    %290 = vmatpush1.msra.mxu0 0.0
    %291 = vmatprep.subr.mxu0 0.0
    %292 = vmatpush1.msra.mxu0 0.0
    %293 = vmatprep.subr.mxu0 0.0
    %294 = vmatpush1.msra.mxu0 0.0
    %295 = vmatprep.subr.mxu0 0.0
    %296 = vmatpush1.msra.mxu0 0.0
    %297 = vmatprep.subr.mxu0 0.0
    %298 = vmatpush1.msra.mxu0 0.0
    %299 = vmatprep.subr.mxu0 0.0
    %300 = vmatpush1.msra.mxu0 0.0
    %301 = vmatprep.subr.mxu0 0.0
    %302 = vmatpush1.msra.mxu0 0.0
    %303 = vmatprep.subr.mxu0 0.0
    %304 = vmatpush1.msra.mxu0 0.0
    %305 = vmatprep.subr.mxu0 0.0
    %306 = vmatpush1.msra.mxu0 0.0
    %307 = vmatprep.subr.mxu0 0.0
    %308 = vmatpush1.msra.mxu0 0.0
    %309 = vmatprep.subr.mxu0 0.0
    %310 = vmatpush1.msra.mxu0 0.0
    %311 = vmatprep.subr.mxu0 0.0
    %312 = vmatpush1.msra.mxu0 0.0
    %313 = vmatprep.subr.mxu0 0.0
    %314 = vmatpush1.msra.mxu0 0.0
    %315 = vmatprep.subr.mxu0 0.0
    %316 = vmatpush1.msra.mxu0 0.0
    %317 = vmatprep.subr.mxu0 0.0
    %318 = vmatpush1.msra.mxu0 0.0
    %319 = vmatprep.subr.mxu0 0.0
    %320 = vmatpush1.msra.mxu0 0.0
    %321 = vmatprep.subr.mxu0 0.0
    %322 = vmatpush1.msra.mxu0 0.0
    %323 = vmatprep.mubr.f32.mxu0 0.0
    %324 = vmatmul.mubr.f32.gmra.mrb[0].mxu0 %v257
    %v325 = vpop.f32.mrb[0].mxu0
    %v326 = vadd.f32 %v253, %v325
    %v327 = vpop.f32.mrb[0].mxu0
    %328 = vdwg.mxu0
    %vm329 = vcmask 519168
    %v330 = vsel %vm329, %v326, 0.0
    %331 = vadd.xlane.f32.xlu0 %v330
    %v332 = vpop.xlane.xlu0 %331
    %v333 = vmul.f32 %v332, %v184
    %v334 = vsub.f32 %v326, %v333
    %v335 = vmul.f32 %v334, %v334
    %v336 = vsel %vm329, %v335, 0.0
    %337 = vadd.xlane.f32.xlu0 %v336
    %v338 = vpop.xlane.xlu0 %337
    %v339 = vmul.f32 %v338, %v184
    %v340 = vadd.f32 %v339, 1e-05
    %v341 = vrsqrt.pop %v340
    %v342 = vmul.f32 %v334, %v341
    %v344 = vlaneseq
    %v345 = vshrl.u32 %v344, 7
    %v346 = vsub.s32 0, %v345
    %v347 = vrot.slane %v226, %v346
    %v349 = vmul.f32 %v342, %v347
    %v351 = vlaneseq
    %v352 = vshrl.u32 %v351, 7
    %v353 = vsub.s32 0, %v352
    %v354 = vrot.slane %v227, %v353
    %v356 = vadd.f32 %v349, %v354
    %v357 = vadd.f32 %v248, %v356
    %v358 = vxor.u32 %v357, 2147483648
    %v359 = vmul.f32 %v358, 1.442695
    %v360 = vpow.pop %v359
    %v361 = vadd.f32 %v360, 1.0
    %v362 = vrcp.pop %v361
    %v363 = vmul.f32 1.0, %v362
    %v364 = vtanh.pop %v357
    %v365 = vmul.f32 %v363, 0.0
    %367 = vrot.lane.b32.xlu0 %v364, 96
    %v368 = vpop.permute.xlu0 %367
    %v370 = vmul.f32 %v363, %v368
    %372 = vrot.lane.b32.xlu0 %v370, 16
    %v373 = vpop.permute.xlu0 %372
    %v375 = vadd.f32 %v365, %v373
    %377 = vrot.lane.b32.xlu0 %v375, 112
    %v378 = vpop.permute.xlu0 %377
    %vm380 = vcmask 125952
    %v381 = vsel %vm380, %v378, 0.0
    %382 = vadd.xlane.f32.xlu0 %v381
    %v383 = vpop.xlane.xlu0 %382
    %v384 = vrcp.pop 16.0
    %v385 = vmul.f32 %v383, %v384
    %v386 = vsub.f32 %v375, %v385
    %v387 = vmul.f32 %v386, %v386
    %389 = vrot.lane.b32.xlu0 %v387, 112
    %v390 = vpop.permute.xlu0 %389
    %v392 = vsel %vm380, %v390, 0.0
    %393 = vadd.xlane.f32.xlu0 %v392
    %v394 = vpop.xlane.xlu0 %393
    %v395 = vmul.f32 %v394, %v384
    %v396 = vadd.f32 %v395, 1e-05
    %v397 = vrsqrt.pop %v396
    %v398 = vmul.f32 %v386, %v397
    %v400 = vlaneseq
    %v401 = vshrl.u32 %v400, 7
    %v402 = vsub.s32 0, %v401
    %v403 = vrot.slane %v228, %v402
    %404 = vrot.lane.b32.xlu0 %v403, 16
    %v405 = vpop.permute.xlu0 %404
    %v407 = vmul.f32 %v398, %v405
    %v409 = vlaneseq
    %v410 = vshrl.u32 %v409, 7
    %v411 = vsub.s32 0, %v410
    %v412 = vrot.slane %v229, %v411
    %413 = vrot.lane.b32.xlu0 %v412, 16
    %v414 = vpop.permute.xlu0 %413
    %v416 = vadd.f32 %v407, %v414
    %v417 = vtanh.pop %v416
    %419 = vrot.lane.b32.xlu0 %v417, 32
    %v420 = vpop.permute.xlu0 %419
    %v422 = vmul.f32 %v363, %v420
    %v425 = vunpack.c.l.s4 1966171168
    %v426 = vunpack.c.0.s8 %v425
    %v427 = vlaneseq
    %v428 = vshrl.u32 %v427, 7
    %v429 = vsub.s32 %v426, %v428
    %v430 = vrot.slane %v422, %v429
    %v431 = vcombine.high %v430, %v430
    %v433 = vunpack.c.l.s4 1966171168
    %v434 = vunpack.c.0.s8 %v433
    %v435 = vlaneseq
    %v436 = vshrl.u32 %v435, 7
    %v437 = vsub.s32 %v434, %v436
    %v438 = vrot.slane %v430, %v437
    %v440 = vunpack.c.l.s4 1966171168
    %v441 = vunpack.c.0.s8 %v440
    %v442 = vlaneseq
    %v443 = vshrl.u32 %v442, 7
    %v444 = vsub.s32 %v441, %v443
    %v445 = vrot.slane %v431, %v444
    %v446 = vlaneseq
    %v447 = vshrl.u32 %v446, 7
    %v448 = vsub.s32 0, %v447
    %v449 = vrot.slane %v438, %v448
    %v450 = vlaneseq
    %v451 = vshrl.u32 %v450, 7
    %v452 = vsub.s32 0, %v451
    %v453 = vrot.slane %v445, %v452
    %454 = vrot.lane.b32.xlu0 %v449, 80
    %v455 = vpop.permute.xlu0 %454
    %456 = vrot.lane.b32.xlu0 %v453, 80
    %v457 = vpop.permute.xlu0 %456
    %vm460 = vcmask 122880
    %461 = vst.msk [vmem:[#allocation9] sm:$0x1] %vm460, %v455
    %462 = vst.msk [vmem:[#allocation9 + $0x8] sm:$0x1] %vm460, %v457
    %v463 = vcombine.high %v438, %v438
    %v464 = vcombine.high %v445, %v445
    %v465 = vlaneseq
    %v466 = vshrl.u32 %v465, 7
    %v467 = vsub.s32 0, %v466
    %v468 = vrot.slane %v463, %v467
    %v469 = vlaneseq
    %v470 = vshrl.u32 %v469, 7
    %v471 = vsub.s32 0, %v470
    %v472 = vrot.slane %v464, %v471
    %473 = vrot.lane.b32.xlu0 %v468, 96
    %v474 = vpop.permute.xlu0 %473
    %475 = vrot.lane.b32.xlu0 %v472, 96
    %v476 = vpop.permute.xlu0 %475
    %vm479 = vcmask 254080
    %480 = vst.msk [vmem:[#allocation9 + $0x7] sm:$0x1] %vm479, %v474
    %481 = vst.msk [vmem:[#allocation9 + $0xf] sm:$0x1] %vm479, %v476
    %v482 = vld [vmem:[#allocation2 + $0x1] sm:$0x1]
    %v483 = vld [vmem:[#allocation2 + $0x9] sm:$0x1]
    %v484 = vld [vmem:[#allocation2 + $0x6] sm:$0x1]
    %v485 = vld [vmem:[#allocation2 + $0xe] sm:$0x1]
    %v488 = vrot.slane %v483, 7
    %v489 = vsel %vm237, %v488, %v482
    %v493 = vrot.slane %v484, 6
    %v494 = vrot.slane %v485, 5
    %v495 = vsel %vm244, %v494, %v493
    %v497 = vsel %vm247, %v489, %v495
    %498 = vrot.lane.b32.xlu0 %v422, 80
    %v499 = vpop.permute.xlu0 %498
    %v500 = vsel %vm255, %v499, 0
    %502 = vmatprep.subr.mxu0 0.0
    %503 = vmatpush1.msra.mxu0 %v223
    %504 = vmatprep.subr.mxu0 0.0
    %505 = vmatpush1.msra.mxu0 %v224
    %506 = vmatprep.subr.mxu0 0.0
    %507 = vmatpush1.msra.mxu0 0.0
    %508 = vmatprep.subr.mxu0 0.0
    %509 = vmatpush1.msra.mxu0 0.0
    %510 = vmatprep.subr.mxu0 0.0
    %511 = vmatpush1.msra.mxu0 0.0
    %512 = vmatprep.subr.mxu0 0.0
    %513 = vmatpush1.msra.mxu0 0.0
    %514 = vmatprep.subr.mxu0 0.0
    %515 = vmatpush1.msra.mxu0 0.0
    %516 = vmatprep.subr.mxu0 0.0
    %517 = vmatpush1.msra.mxu0 0.0
    %518 = vmatprep.subr.mxu0 0.0
    %519 = vmatpush1.msra.mxu0 0.0
    %520 = vmatprep.subr.mxu0 0.0
    %521 = vmatpush1.msra.mxu0 0.0
    %522 = vmatprep.subr.mxu0 0.0
    %523 = vmatpush1.msra.mxu0 0.0
    %524 = vmatprep.subr.mxu0 0.0
    %525 = vmatpush1.msra.mxu0 0.0
    %526 = vmatprep.subr.mxu0 0.0
    %527 = vmatpush1.msra.mxu0 0.0
    %528 = vmatprep.subr.mxu0 0.0
    %529 = vmatpush1.msra.mxu0 0.0
    %530 = vmatprep.subr.mxu0 0.0
    %531 = vmatpush1.msra.mxu0 0.0
    %532 = vmatprep.subr.mxu0 0.0
    %533 = vmatpush1.msra.mxu0 0.0
    %534 = vmatprep.subr.mxu0 0.0
    %535 = vmatpush1.msra.mxu0 0.0
    %536 = vmatprep.subr.mxu0 0.0
    %537 = vmatpush1.msra.mxu0 0.0
    %538 = vmatprep.subr.mxu0 0.0
    %539 = vmatpush1.msra.mxu0 0.0
    %540 = vmatprep.subr.mxu0 0.0
    %541 = vmatpush1.msra.mxu0 0.0
    %542 = vmatprep.subr.mxu0 0.0
    %543 = vmatpush1.msra.mxu0 0.0
    %544 = vmatprep.subr.mxu0 0.0
    %545 = vmatpush1.msra.mxu0 0.0
    %546 = vmatprep.subr.mxu0 0.0
    %547 = vmatpush1.msra.mxu0 0.0
    %548 = vmatprep.subr.mxu0 0.0
    %549 = vmatpush1.msra.mxu0 0.0
    %550 = vmatprep.subr.mxu0 0.0
    %551 = vmatpush1.msra.mxu0 0.0
    %552 = vmatprep.subr.mxu0 0.0
    %553 = vmatpush1.msra.mxu0 0.0
    %554 = vmatprep.subr.mxu0 0.0
    %555 = vmatpush1.msra.mxu0 0.0
    %556 = vmatprep.subr.mxu0 0.0
    %557 = vmatpush1.msra.mxu0 0.0
    %558 = vmatprep.subr.mxu0 0.0
    %559 = vmatpush1.msra.mxu0 0.0
    %560 = vmatprep.subr.mxu0 0.0
    %561 = vmatpush1.msra.mxu0 0.0
    %562 = vmatprep.subr.mxu0 0.0
    %563 = vmatpush1.msra.mxu0 0.0
    %564 = vmatprep.subr.mxu0 0.0
    %565 = vmatpush1.msra.mxu0 0.0
    %566 = vmatprep.mubr.f32.mxu0 0.0
    %567 = vmatmul.mubr.f32.gmra.mrb[0].mxu0 %v500
    %v568 = vpop.f32.mrb[0].mxu0
    %v569 = vadd.f32 %v253, %v568
    %v570 = vpop.f32.mrb[0].mxu0
    %571 = vdwg.mxu0
    %v572 = vsel %vm329, %v569, 0.0
    %573 = vadd.xlane.f32.xlu0 %v572
    %v574 = vpop.xlane.xlu0 %573
    %v575 = vmul.f32 %v574, %v184
    %v576 = vsub.f32 %v569, %v575
    %v577 = vmul.f32 %v576, %v576
    %v578 = vsel %vm329, %v577, 0.0
    %579 = vadd.xlane.f32.xlu0 %v578
    %v580 = vpop.xlane.xlu0 %579
    %v581 = vmul.f32 %v580, %v184
    %v582 = vadd.f32 %v581, 1e-05
    %v583 = vrsqrt.pop %v582
    %v584 = vmul.f32 %v576, %v583
    %v585 = vmul.f32 %v584, %v347
    %v586 = vadd.f32 %v585, %v354
    %v587 = vadd.f32 %v497, %v586
    %v588 = vxor.u32 %v587, 2147483648
    %v589 = vmul.f32 %v588, 1.442695
    %v590 = vpow.pop %v589
    %v591 = vadd.f32 %v590, 1.0
    %v592 = vrcp.pop %v591
    %v593 = vmul.f32 1.0, %v592
    %v594 = vtanh.pop %v587
    %v595 = vmul.f32 %v593, %v375
    %597 = vrot.lane.b32.xlu0 %v594, 96
    %v598 = vpop.permute.xlu0 %597
    %v600 = vmul.f32 %v593, %v598
    %602 = vrot.lane.b32.xlu0 %v600, 16
    %v603 = vpop.permute.xlu0 %602
    %v605 = vadd.f32 %v595, %v603
    %607 = vrot.lane.b32.xlu0 %v605, 112
    %v608 = vpop.permute.xlu0 %607
    %v610 = vsel %vm380, %v608, 0.0
    %611 = vadd.xlane.f32.xlu0 %v610
    %v612 = vpop.xlane.xlu0 %611
    %v613 = vmul.f32 %v612, %v384
    %v614 = vsub.f32 %v605, %v613
    %v615 = vmul.f32 %v614, %v614
    %617 = vrot.lane.b32.xlu0 %v615, 112
    %v618 = vpop.permute.xlu0 %617
    %v620 = vsel %vm380, %v618, 0.0
    %621 = vadd.xlane.f32.xlu0 %v620
    %v622 = vpop.xlane.xlu0 %621
    %v623 = vmul.f32 %v622, %v384
    %v624 = vadd.f32 %v623, 1e-05
    %v625 = vrsqrt.pop %v624
    %v626 = vmul.f32 %v614, %v625
    %v627 = vmul.f32 %v626, %v405
    %v628 = vadd.f32 %v627, %v414
    %v629 = vtanh.pop %v628
    %631 = vrot.lane.b32.xlu0 %v629, 32
    %v632 = vpop.permute.xlu0 %631
    %v634 = vmul.f32 %v593, %v632
    %v637 = vunpack.c.l.s4 1966171168
    %v638 = vunpack.c.0.s8 %v637
    %v639 = vlaneseq
    %v640 = vshrl.u32 %v639, 7
    %v641 = vsub.s32 %v638, %v640
    %v642 = vrot.slane %v634, %v641
    %v643 = vcombine.high %v642, %v642
    %v645 = vunpack.c.l.s4 1966171168
    %v646 = vunpack.c.0.s8 %v645
    %v647 = vlaneseq
    %v648 = vshrl.u32 %v647, 7
    %v649 = vsub.s32 %v646, %v648
    %v650 = vrot.slane %v642, %v649
    %v652 = vunpack.c.l.s4 1966171168
    %v653 = vunpack.c.0.s8 %v652
    %v654 = vlaneseq
    %v655 = vshrl.u32 %v654, 7
    %v656 = vsub.s32 %v653, %v655
    %v657 = vrot.slane %v643, %v656
    %v658 = vlaneseq
    %v659 = vshrl.u32 %v658, 7
    %v660 = vsub.s32 0, %v659
    %v661 = vrot.slane %v650, %v660
    %v662 = vlaneseq
    %v663 = vshrl.u32 %v662, 7
    %v664 = vsub.s32 0, %v663
    %v665 = vrot.slane %v657, %v664
    %666 = vrot.lane.b32.xlu0 %v661, 80
    %v667 = vpop.permute.xlu0 %666
    %668 = vrot.lane.b32.xlu0 %v665, 80
    %v669 = vpop.permute.xlu0 %668
    %672 = vst.msk [vmem:[#allocation9 + $0x1] sm:$0x1] %vm460, %v667
    %673 = vst.msk [vmem:[#allocation9 + $0x9] sm:$0x1] %vm460, %v669
    %v674 = vcombine.high %v650, %v650
    %v675 = vcombine.high %v657, %v657
    %v676 = vlaneseq
    %v677 = vshrl.u32 %v676, 7
    %v678 = vsub.s32 0, %v677
    %v679 = vrot.slane %v674, %v678
    %v680 = vlaneseq
    %v681 = vshrl.u32 %v680, 7
    %v682 = vsub.s32 0, %v681
    %v683 = vrot.slane %v675, %v682
    %684 = vrot.lane.b32.xlu0 %v679, 96
    %v685 = vpop.permute.xlu0 %684
    %686 = vrot.lane.b32.xlu0 %v683, 96
    %v687 = vpop.permute.xlu0 %686
    %690 = vst.msk [vmem:[#allocation9 + $0x6] sm:$0x1] %vm479, %v685
    %691 = vst.msk [vmem:[#allocation9 + $0xe] sm:$0x1] %vm479, %v687
    %v692 = vld [vmem:[#allocation2 + $0x2] sm:$0x1]
    %v693 = vld [vmem:[#allocation2 + $0xa] sm:$0x1]
    %v694 = vld [vmem:[#allocation2 + $0x5] sm:$0x1]
    %v695 = vld [vmem:[#allocation2 + $0xd] sm:$0x1]
    %v698 = vrot.slane %v693, 7
    %v699 = vsel %vm237, %v698, %v692
    %v703 = vrot.slane %v694, 6
    %v704 = vrot.slane %v695, 5
    %v705 = vsel %vm244, %v704, %v703
    %v707 = vsel %vm247, %v699, %v705
    %708 = vrot.lane.b32.xlu0 %v634, 80
    %v709 = vpop.permute.xlu0 %708
    %v710 = vsel %vm255, %v709, 0
    %712 = vmatprep.subr.mxu0 0.0
    %713 = vmatpush1.msra.mxu0 %v223
    %714 = vmatprep.subr.mxu0 0.0
    %715 = vmatpush1.msra.mxu0 %v224
    %716 = vmatprep.subr.mxu0 0.0
    %717 = vmatpush1.msra.mxu0 0.0
    %718 = vmatprep.subr.mxu0 0.0
    %719 = vmatpush1.msra.mxu0 0.0
    %720 = vmatprep.subr.mxu0 0.0
    %721 = vmatpush1.msra.mxu0 0.0
    %722 = vmatprep.subr.mxu0 0.0
    %723 = vmatpush1.msra.mxu0 0.0
    %724 = vmatprep.subr.mxu0 0.0
    %725 = vmatpush1.msra.mxu0 0.0
    %726 = vmatprep.subr.mxu0 0.0
    %727 = vmatpush1.msra.mxu0 0.0
    %728 = vmatprep.subr.mxu0 0.0
    %729 = vmatpush1.msra.mxu0 0.0
    %730 = vmatprep.subr.mxu0 0.0
    %731 = vmatpush1.msra.mxu0 0.0
    %732 = vmatprep.subr.mxu0 0.0
    %733 = vmatpush1.msra.mxu0 0.0
    %734 = vmatprep.subr.mxu0 0.0
    %735 = vmatpush1.msra.mxu0 0.0
    %736 = vmatprep.subr.mxu0 0.0
    %737 = vmatpush1.msra.mxu0 0.0
    %738 = vmatprep.subr.mxu0 0.0
    %739 = vmatpush1.msra.mxu0 0.0
    %740 = vmatprep.subr.mxu0 0.0
    %741 = vmatpush1.msra.mxu0 0.0
    %742 = vmatprep.subr.mxu0 0.0
    %743 = vmatpush1.msra.mxu0 0.0
    %744 = vmatprep.subr.mxu0 0.0
    %745 = vmatpush1.msra.mxu0 0.0
    %746 = vmatprep.subr.mxu0 0.0
    %747 = vmatpush1.msra.mxu0 0.0
    %748 = vmatprep.subr.mxu0 0.0
    %749 = vmatpush1.msra.mxu0 0.0
    %750 = vmatprep.subr.mxu0 0.0
    %751 = vmatpush1.msra.mxu0 0.0
    %752 = vmatprep.subr.mxu0 0.0
    %753 = vmatpush1.msra.mxu0 0.0
    %754 = vmatprep.subr.mxu0 0.0
    %755 = vmatpush1.msra.mxu0 0.0
    %756 = vmatprep.subr.mxu0 0.0
    %757 = vmatpush1.msra.mxu0 0.0
    %758 = vmatprep.subr.mxu0 0.0
    %759 = vmatpush1.msra.mxu0 0.0
    %760 = vmatprep.subr.mxu0 0.0
    %761 = vmatpush1.msra.mxu0 0.0
    %762 = vmatprep.subr.mxu0 0.0
    %763 = vmatpush1.msra.mxu0 0.0
    %764 = vmatprep.subr.mxu0 0.0
    %765 = vmatpush1.msra.mxu0 0.0
    %766 = vmatprep.subr.mxu0 0.0
    %767 = vmatpush1.msra.mxu0 0.0
    %768 = vmatprep.subr.mxu0 0.0
    %769 = vmatpush1.msra.mxu0 0.0
    %770 = vmatprep.subr.mxu0 0.0
    %771 = vmatpush1.msra.mxu0 0.0
    %772 = vmatprep.subr.mxu0 0.0
    %773 = vmatpush1.msra.mxu0 0.0
    %774 = vmatprep.subr.mxu0 0.0
    %775 = vmatpush1.msra.mxu0 0.0
    %776 = vmatprep.mubr.f32.mxu0 0.0
    %777 = vmatmul.mubr.f32.gmra.mrb[0].mxu0 %v710
    %v778 = vpop.f32.mrb[0].mxu0
    %v779 = vadd.f32 %v253, %v778
    %v780 = vpop.f32.mrb[0].mxu0
    %781 = vdwg.mxu0
    %v782 = vsel %vm329, %v779, 0.0
    %783 = vadd.xlane.f32.xlu0 %v782
    %v784 = vpop.xlane.xlu0 %783
    %v785 = vmul.f32 %v784, %v184
    %v786 = vsub.f32 %v779, %v785
    %v787 = vmul.f32 %v786, %v786
    %v788 = vsel %vm329, %v787, 0.0
    %789 = vadd.xlane.f32.xlu0 %v788
    %v790 = vpop.xlane.xlu0 %789
    %v791 = vmul.f32 %v790, %v184
    %v792 = vadd.f32 %v791, 1e-05
    %v793 = vrsqrt.pop %v792
    %v794 = vmul.f32 %v786, %v793
    %v795 = vmul.f32 %v794, %v347
    %v796 = vadd.f32 %v795, %v354
    %v797 = vadd.f32 %v707, %v796
    %v798 = vxor.u32 %v797, 2147483648
    %v799 = vmul.f32 %v798, 1.442695
    %v800 = vpow.pop %v799
    %v801 = vadd.f32 %v800, 1.0
    %v802 = vrcp.pop %v801
    %v803 = vmul.f32 1.0, %v802
    %v804 = vtanh.pop %v797
    %v805 = vmul.f32 %v803, %v605
    %807 = vrot.lane.b32.xlu0 %v804, 96
    %v808 = vpop.permute.xlu0 %807
    %v810 = vmul.f32 %v803, %v808
    %812 = vrot.lane.b32.xlu0 %v810, 16
    %v813 = vpop.permute.xlu0 %812
    %v815 = vadd.f32 %v805, %v813
    %817 = vrot.lane.b32.xlu0 %v815, 112
    %v818 = vpop.permute.xlu0 %817
    %v820 = vsel %vm380, %v818, 0.0
    %821 = vadd.xlane.f32.xlu0 %v820
    %v822 = vpop.xlane.xlu0 %821
    %v823 = vmul.f32 %v822, %v384
    %v824 = vsub.f32 %v815, %v823
    %v825 = vmul.f32 %v824, %v824
    %827 = vrot.lane.b32.xlu0 %v825, 112
    %v828 = vpop.permute.xlu0 %827
    %v830 = vsel %vm380, %v828, 0.0
    %831 = vadd.xlane.f32.xlu0 %v830
    %v832 = vpop.xlane.xlu0 %831
    %v833 = vmul.f32 %v832, %v384
    %v834 = vadd.f32 %v833, 1e-05
    %v835 = vrsqrt.pop %v834
    %v836 = vmul.f32 %v824, %v835
    %v837 = vmul.f32 %v836, %v405
    %v838 = vadd.f32 %v837, %v414
    %v839 = vtanh.pop %v838
    %841 = vrot.lane.b32.xlu0 %v839, 32
    %v842 = vpop.permute.xlu0 %841
    %v844 = vmul.f32 %v803, %v842
    %v847 = vunpack.c.l.s4 1966171168
    %v848 = vunpack.c.0.s8 %v847
    %v849 = vlaneseq
    %v850 = vshrl.u32 %v849, 7
    %v851 = vsub.s32 %v848, %v850
    %v852 = vrot.slane %v844, %v851
    %v853 = vcombine.high %v852, %v852
    %v855 = vunpack.c.l.s4 1966171168
    %v856 = vunpack.c.0.s8 %v855
    %v857 = vlaneseq
    %v858 = vshrl.u32 %v857, 7
    %v859 = vsub.s32 %v856, %v858
    %v860 = vrot.slane %v852, %v859
    %v862 = vunpack.c.l.s4 1966171168
    %v863 = vunpack.c.0.s8 %v862
    %v864 = vlaneseq
    %v865 = vshrl.u32 %v864, 7
    %v866 = vsub.s32 %v863, %v865
    %v867 = vrot.slane %v853, %v866
    %v868 = vlaneseq
    %v869 = vshrl.u32 %v868, 7
    %v870 = vsub.s32 0, %v869
    %v871 = vrot.slane %v860, %v870
    %v872 = vlaneseq
    %v873 = vshrl.u32 %v872, 7
    %v874 = vsub.s32 0, %v873
    %v875 = vrot.slane %v867, %v874
    %876 = vrot.lane.b32.xlu0 %v871, 80
    %v877 = vpop.permute.xlu0 %876
    %878 = vrot.lane.b32.xlu0 %v875, 80
    %v879 = vpop.permute.xlu0 %878
    %882 = vst.msk [vmem:[#allocation9 + $0x2] sm:$0x1] %vm460, %v877
    %883 = vst.msk [vmem:[#allocation9 + $0xa] sm:$0x1] %vm460, %v879
    %v884 = vcombine.high %v860, %v860
    %v885 = vcombine.high %v867, %v867
    %v886 = vlaneseq
    %v887 = vshrl.u32 %v886, 7
    %v888 = vsub.s32 0, %v887
    %v889 = vrot.slane %v884, %v888
    %v890 = vlaneseq
    %v891 = vshrl.u32 %v890, 7
    %v892 = vsub.s32 0, %v891
    %v893 = vrot.slane %v885, %v892
    %894 = vrot.lane.b32.xlu0 %v889, 96
    %v895 = vpop.permute.xlu0 %894
    %896 = vrot.lane.b32.xlu0 %v893, 96
    %v897 = vpop.permute.xlu0 %896
    %900 = vst.msk [vmem:[#allocation9 + $0x5] sm:$0x1] %vm479, %v895
    %901 = vst.msk [vmem:[#allocation9 + $0xd] sm:$0x1] %vm479, %v897
    %v902 = vld [vmem:[#allocation2 + $0x3] sm:$0x1]
    %v903 = vld [vmem:[#allocation2 + $0xb] sm:$0x1]
    %v904 = vld [vmem:[#allocation2 + $0x4] sm:$0x1]
    %v905 = vld [vmem:[#allocation2 + $0xc] sm:$0x1]
    %v908 = vrot.slane %v903, 7
    %v909 = vsel %vm237, %v908, %v902
    %v913 = vrot.slane %v904, 6
    %v914 = vrot.slane %v905, 5
    %v915 = vsel %vm244, %v914, %v913
    %v917 = vsel %vm247, %v909, %v915
    %918 = vrot.lane.b32.xlu0 %v844, 80
    %v919 = vpop.permute.xlu0 %918
    %v920 = vsel %vm255, %v919, 0
    %922 = vmatprep.subr.mxu0 0.0
    %923 = vmatpush1.msra.mxu0 %v223
    %924 = vmatprep.subr.mxu0 0.0
    %925 = vmatpush1.msra.mxu0 %v224
    %926 = vmatprep.subr.mxu0 0.0
    %927 = vmatpush1.msra.mxu0 0.0
    %928 = vmatprep.subr.mxu0 0.0
    %929 = vmatpush1.msra.mxu0 0.0
    %930 = vmatprep.subr.mxu0 0.0
    %931 = vmatpush1.msra.mxu0 0.0
    %932 = vmatprep.subr.mxu0 0.0
    %933 = vmatpush1.msra.mxu0 0.0
    %934 = vmatprep.subr.mxu0 0.0
    %935 = vmatpush1.msra.mxu0 0.0
    %936 = vmatprep.subr.mxu0 0.0
    %937 = vmatpush1.msra.mxu0 0.0
    %938 = vmatprep.subr.mxu0 0.0
    %939 = vmatpush1.msra.mxu0 0.0
    %940 = vmatprep.subr.mxu0 0.0
    %941 = vmatpush1.msra.mxu0 0.0
    %942 = vmatprep.subr.mxu0 0.0
    %943 = vmatpush1.msra.mxu0 0.0
    %944 = vmatprep.subr.mxu0 0.0
    %945 = vmatpush1.msra.mxu0 0.0
    %946 = vmatprep.subr.mxu0 0.0
    %947 = vmatpush1.msra.mxu0 0.0
    %948 = vmatprep.subr.mxu0 0.0
    %949 = vmatpush1.msra.mxu0 0.0
    %950 = vmatprep.subr.mxu0 0.0
    %951 = vmatpush1.msra.mxu0 0.0
    %952 = vmatprep.subr.mxu0 0.0
    %953 = vmatpush1.msra.mxu0 0.0
    %954 = vmatprep.subr.mxu0 0.0
    %955 = vmatpush1.msra.mxu0 0.0
    %956 = vmatprep.subr.mxu0 0.0
    %957 = vmatpush1.msra.mxu0 0.0
    %958 = vmatprep.subr.mxu0 0.0
    %959 = vmatpush1.msra.mxu0 0.0
    %960 = vmatprep.subr.mxu0 0.0
    %961 = vmatpush1.msra.mxu0 0.0
    %962 = vmatprep.subr.mxu0 0.0
    %963 = vmatpush1.msra.mxu0 0.0
    %964 = vmatprep.subr.mxu0 0.0
    %965 = vmatpush1.msra.mxu0 0.0
    %966 = vmatprep.subr.mxu0 0.0
    %967 = vmatpush1.msra.mxu0 0.0
    %968 = vmatprep.subr.mxu0 0.0
    %969 = vmatpush1.msra.mxu0 0.0
    %970 = vmatprep.subr.mxu0 0.0
    %971 = vmatpush1.msra.mxu0 0.0
    %972 = vmatprep.subr.mxu0 0.0
    %973 = vmatpush1.msra.mxu0 0.0
    %974 = vmatprep.subr.mxu0 0.0
    %975 = vmatpush1.msra.mxu0 0.0
    %976 = vmatprep.subr.mxu0 0.0
    %977 = vmatpush1.msra.mxu0 0.0
    %978 = vmatprep.subr.mxu0 0.0
    %979 = vmatpush1.msra.mxu0 0.0
    %980 = vmatprep.subr.mxu0 0.0
    %981 = vmatpush1.msra.mxu0 0.0
    %982 = vmatprep.subr.mxu0 0.0
    %983 = vmatpush1.msra.mxu0 0.0
    %984 = vmatprep.subr.mxu0 0.0
    %985 = vmatpush1.msra.mxu0 0.0
    %986 = vmatprep.mubr.f32.mxu0 0.0
    %987 = vmatmul.mubr.f32.gmra.mrb[0].mxu0 %v920
    %v988 = vpop.f32.mrb[0].mxu0
    %v989 = vadd.f32 %v253, %v988
    %v990 = vpop.f32.mrb[0].mxu0
    %991 = vdwg.mxu0
    %v992 = vsel %vm329, %v989, 0.0
    %993 = vadd.xlane.f32.xlu0 %v992
    %v994 = vpop.xlane.xlu0 %993
    %v995 = vmul.f32 %v994, %v184
    %v996 = vsub.f32 %v989, %v995
    %v997 = vmul.f32 %v996, %v996
    %v998 = vsel %vm329, %v997, 0.0
    %999 = vadd.xlane.f32.xlu0 %v998
    %v1000 = vpop.xlane.xlu0 %999
    %v1001 = vmul.f32 %v1000, %v184
    %v1002 = vadd.f32 %v1001, 1e-05
    %v1003 = vrsqrt.pop %v1002
    %v1004 = vmul.f32 %v996, %v1003
    %v1005 = vmul.f32 %v1004, %v347
    %v1006 = vadd.f32 %v1005, %v354
    %v1007 = vadd.f32 %v917, %v1006
    %v1008 = vxor.u32 %v1007, 2147483648
    %v1009 = vmul.f32 %v1008, 1.442695
    %v1010 = vpow.pop %v1009
    %v1011 = vadd.f32 %v1010, 1.0
    %v1012 = vrcp.pop %v1011
    %v1013 = vmul.f32 1.0, %v1012
    %v1014 = vtanh.pop %v1007
    %v1015 = vmul.f32 %v1013, %v815
    %1017 = vrot.lane.b32.xlu0 %v1014, 96
    %v1018 = vpop.permute.xlu0 %1017
    %v1020 = vmul.f32 %v1013, %v1018
    %1022 = vrot.lane.b32.xlu0 %v1020, 16
    %v1023 = vpop.permute.xlu0 %1022
    %v1025 = vadd.f32 %v1015, %v1023
    %1027 = vrot.lane.b32.xlu0 %v1025, 112
    %v1028 = vpop.permute.xlu0 %1027
    %v1030 = vsel %vm380, %v1028, 0.0
    %1031 = vadd.xlane.f32.xlu0 %v1030
    %v1032 = vpop.xlane.xlu0 %1031
    %v1033 = vmul.f32 %v1032, %v384
    %v1034 = vsub.f32 %v1025, %v1033
    %v1035 = vmul.f32 %v1034, %v1034
    %1037 = vrot.lane.b32.xlu0 %v1035, 112
    %v1038 = vpop.permute.xlu0 %1037
    %v1040 = vsel %vm380, %v1038, 0.0
    %1041 = vadd.xlane.f32.xlu0 %v1040
    %v1042 = vpop.xlane.xlu0 %1041
    %v1043 = vmul.f32 %v1042, %v384
    %v1044 = vadd.f32 %v1043, 1e-05
    %v1045 = vrsqrt.pop %v1044
    %v1046 = vmul.f32 %v1034, %v1045
    %v1047 = vmul.f32 %v1046, %v405
    %v1048 = vadd.f32 %v1047, %v414
    %v1049 = vtanh.pop %v1048
    %1051 = vrot.lane.b32.xlu0 %v1049, 32
    %v1052 = vpop.permute.xlu0 %1051
    %v1054 = vmul.f32 %v1013, %v1052
    %v1057 = vunpack.c.l.s4 1966171168
    %v1058 = vunpack.c.0.s8 %v1057
    %v1059 = vlaneseq
    %v1060 = vshrl.u32 %v1059, 7
    %v1061 = vsub.s32 %v1058, %v1060
    %v1062 = vrot.slane %v1054, %v1061
    %v1063 = vcombine.high %v1062, %v1062
    %v1065 = vunpack.c.l.s4 1966171168
    %v1066 = vunpack.c.0.s8 %v1065
    %v1067 = vlaneseq
    %v1068 = vshrl.u32 %v1067, 7
    %v1069 = vsub.s32 %v1066, %v1068
    %v1070 = vrot.slane %v1062, %v1069
    %v1072 = vunpack.c.l.s4 1966171168
    %v1073 = vunpack.c.0.s8 %v1072
    %v1074 = vlaneseq
    %v1075 = vshrl.u32 %v1074, 7
    %v1076 = vsub.s32 %v1073, %v1075
    %v1077 = vrot.slane %v1063, %v1076
    %v1078 = vlaneseq
    %v1079 = vshrl.u32 %v1078, 7
    %v1080 = vsub.s32 0, %v1079
    %v1081 = vrot.slane %v1070, %v1080
    %v1082 = vlaneseq
    %v1083 = vshrl.u32 %v1082, 7
    %v1084 = vsub.s32 0, %v1083
    %v1085 = vrot.slane %v1077, %v1084
    %1086 = vrot.lane.b32.xlu0 %v1081, 80
    %v1087 = vpop.permute.xlu0 %1086
    %1088 = vrot.lane.b32.xlu0 %v1085, 80
    %v1089 = vpop.permute.xlu0 %1088
    %1092 = vst.msk [vmem:[#allocation9 + $0x3] sm:$0x1] %vm460, %v1087
    %1093 = vst.msk [vmem:[#allocation9 + $0xb] sm:$0x1] %vm460, %v1089
    %v1094 = vcombine.high %v1070, %v1070
    %v1095 = vcombine.high %v1077, %v1077
    %v1096 = vlaneseq
    %v1097 = vshrl.u32 %v1096, 7
    %v1098 = vsub.s32 0, %v1097
    %v1099 = vrot.slane %v1094, %v1098
    %v1100 = vlaneseq
    %v1101 = vshrl.u32 %v1100, 7
    %v1102 = vsub.s32 0, %v1101
    %v1103 = vrot.slane %v1095, %v1102
    %1104 = vrot.lane.b32.xlu0 %v1099, 96
    %v1105 = vpop.permute.xlu0 %1104
    %1106 = vrot.lane.b32.xlu0 %v1103, 96
    %v1107 = vpop.permute.xlu0 %1106
    %1110 = vst.msk [vmem:[#allocation9 + $0x4] sm:$0x1] %vm479, %v1105
    %1111 = vst.msk [vmem:[#allocation9 + $0xc] sm:$0x1] %vm479, %v1107
    %v1112 = vld [vmem:[#allocation2 + $0x4] sm:$0x1]
    %v1113 = vld [vmem:[#allocation2 + $0xc] sm:$0x1]
    %v1114 = vld [vmem:[#allocation2 + $0x3] sm:$0x1]
    %v1115 = vld [vmem:[#allocation2 + $0xb] sm:$0x1]
    %v1118 = vrot.slane %v1113, 7
    %v1119 = vsel %vm237, %v1118, %v1112
    %v1123 = vrot.slane %v1114, 6
    %v1124 = vrot.slane %v1115, 5
    %v1125 = vsel %vm244, %v1124, %v1123
    %v1127 = vsel %vm247, %v1119, %v1125
    %1128 = vrot.lane.b32.xlu0 %v1054, 80
    %v1129 = vpop.permute.xlu0 %1128
    %v1130 = vsel %vm255, %v1129, 0
    %1132 = vmatprep.subr.mxu0 0.0
    %1133 = vmatpush1.msra.mxu0 %v223
    %1134 = vmatprep.subr.mxu0 0.0
    %1135 = vmatpush1.msra.mxu0 %v224
    %1136 = vmatprep.subr.mxu0 0.0
    %1137 = vmatpush1.msra.mxu0 0.0
    %1138 = vmatprep.subr.mxu0 0.0
    %1139 = vmatpush1.msra.mxu0 0.0
    %1140 = vmatprep.subr.mxu0 0.0
    %1141 = vmatpush1.msra.mxu0 0.0
    %1142 = vmatprep.subr.mxu0 0.0
    %1143 = vmatpush1.msra.mxu0 0.0
    %1144 = vmatprep.subr.mxu0 0.0
    %1145 = vmatpush1.msra.mxu0 0.0
    %1146 = vmatprep.subr.mxu0 0.0
    %1147 = vmatpush1.msra.mxu0 0.0
    %1148 = vmatprep.subr.mxu0 0.0
    %1149 = vmatpush1.msra.mxu0 0.0
    %1150 = vmatprep.subr.mxu0 0.0
    %1151 = vmatpush1.msra.mxu0 0.0
    %1152 = vmatprep.subr.mxu0 0.0
    %1153 = vmatpush1.msra.mxu0 0.0
    %1154 = vmatprep.subr.mxu0 0.0
    %1155 = vmatpush1.msra.mxu0 0.0
    %1156 = vmatprep.subr.mxu0 0.0
    %1157 = vmatpush1.msra.mxu0 0.0
    %1158 = vmatprep.subr.mxu0 0.0
    %1159 = vmatpush1.msra.mxu0 0.0
    %1160 = vmatprep.subr.mxu0 0.0
    %1161 = vmatpush1.msra.mxu0 0.0
    %1162 = vmatprep.subr.mxu0 0.0
    %1163 = vmatpush1.msra.mxu0 0.0
    %1164 = vmatprep.subr.mxu0 0.0
    %1165 = vmatpush1.msra.mxu0 0.0
    %1166 = vmatprep.subr.mxu0 0.0
    %1167 = vmatpush1.msra.mxu0 0.0
    %1168 = vmatprep.subr.mxu0 0.0
    %1169 = vmatpush1.msra.mxu0 0.0
    %1170 = vmatprep.subr.mxu0 0.0
    %1171 = vmatpush1.msra.mxu0 0.0
    %1172 = vmatprep.subr.mxu0 0.0
    %1173 = vmatpush1.msra.mxu0 0.0
    %1174 = vmatprep.subr.mxu0 0.0
    %1175 = vmatpush1.msra.mxu0 0.0
    %1176 = vmatprep.subr.mxu0 0.0
    %1177 = vmatpush1.msra.mxu0 0.0
    %1178 = vmatprep.subr.mxu0 0.0
    %1179 = vmatpush1.msra.mxu0 0.0
    %1180 = vmatprep.subr.mxu0 0.0
    %1181 = vmatpush1.msra.mxu0 0.0
    %1182 = vmatprep.subr.mxu0 0.0
    %1183 = vmatpush1.msra.mxu0 0.0
    %1184 = vmatprep.subr.mxu0 0.0
    %1185 = vmatpush1.msra.mxu0 0.0
    %1186 = vmatprep.subr.mxu0 0.0
    %1187 = vmatpush1.msra.mxu0 0.0
    %1188 = vmatprep.subr.mxu0 0.0
    %1189 = vmatpush1.msra.mxu0 0.0
    %1190 = vmatprep.subr.mxu0 0.0
    %1191 = vmatpush1.msra.mxu0 0.0
    %1192 = vmatprep.subr.mxu0 0.0
    %1193 = vmatpush1.msra.mxu0 0.0
    %1194 = vmatprep.subr.mxu0 0.0
    %1195 = vmatpush1.msra.mxu0 0.0
    %1196 = vmatprep.mubr.f32.mxu0 0.0
    %1197 = vmatmul.mubr.f32.gmra.mrb[0].mxu0 %v1130
    %v1198 = vpop.f32.mrb[0].mxu0
    %v1199 = vadd.f32 %v253, %v1198
    %v1200 = vpop.f32.mrb[0].mxu0
    %1201 = vdwg.mxu0
    %v1202 = vsel %vm329, %v1199, 0.0
    %1203 = vadd.xlane.f32.xlu0 %v1202
    %v1204 = vpop.xlane.xlu0 %1203
    %v1205 = vmul.f32 %v1204, %v184
    %v1206 = vsub.f32 %v1199, %v1205
    %v1207 = vmul.f32 %v1206, %v1206
    %v1208 = vsel %vm329, %v1207, 0.0
    %1209 = vadd.xlane.f32.xlu0 %v1208
    %v1210 = vpop.xlane.xlu0 %1209
    %v1211 = vmul.f32 %v1210, %v184
    %v1212 = vadd.f32 %v1211, 1e-05
    %v1213 = vrsqrt.pop %v1212
    %v1214 = vmul.f32 %v1206, %v1213
    %v1215 = vmul.f32 %v1214, %v347
    %v1216 = vadd.f32 %v1215, %v354
    %v1217 = vadd.f32 %v1127, %v1216
    %v1218 = vxor.u32 %v1217, 2147483648
    %v1219 = vmul.f32 %v1218, 1.442695
    %v1220 = vpow.pop %v1219
    %v1221 = vadd.f32 %v1220, 1.0
    %v1222 = vrcp.pop %v1221
    %v1223 = vmul.f32 1.0, %v1222
    %v1224 = vtanh.pop %v1217
    %v1225 = vmul.f32 %v1223, %v1025
    %1227 = vrot.lane.b32.xlu0 %v1224, 96
    %v1228 = vpop.permute.xlu0 %1227
    %v1230 = vmul.f32 %v1223, %v1228
    %1232 = vrot.lane.b32.xlu0 %v1230, 16
    %v1233 = vpop.permute.xlu0 %1232
    %v1235 = vadd.f32 %v1225, %v1233
    %1237 = vrot.lane.b32.xlu0 %v1235, 112
    %v1238 = vpop.permute.xlu0 %1237
    %v1240 = vsel %vm380, %v1238, 0.0
    %1241 = vadd.xlane.f32.xlu0 %v1240
    %v1242 = vpop.xlane.xlu0 %1241
    %v1243 = vmul.f32 %v1242, %v384
    %v1244 = vsub.f32 %v1235, %v1243
    %v1245 = vmul.f32 %v1244, %v1244
    %1247 = vrot.lane.b32.xlu0 %v1245, 112
    %v1248 = vpop.permute.xlu0 %1247
    %v1250 = vsel %vm380, %v1248, 0.0
    %1251 = vadd.xlane.f32.xlu0 %v1250
    %v1252 = vpop.xlane.xlu0 %1251
    %v1253 = vmul.f32 %v1252, %v384
    %v1254 = vadd.f32 %v1253, 1e-05
    %v1255 = vrsqrt.pop %v1254
    %v1256 = vmul.f32 %v1244, %v1255
    %v1257 = vmul.f32 %v1256, %v405
    %v1258 = vadd.f32 %v1257, %v414
    %v1259 = vtanh.pop %v1258
    %1261 = vrot.lane.b32.xlu0 %v1259, 32
    %v1262 = vpop.permute.xlu0 %1261
    %v1264 = vmul.f32 %v1223, %v1262
    %v1267 = vunpack.c.l.s4 1966171168
    %v1268 = vunpack.c.0.s8 %v1267
    %v1269 = vlaneseq
    %v1270 = vshrl.u32 %v1269, 7
    %v1271 = vsub.s32 %v1268, %v1270
    %v1272 = vrot.slane %v1264, %v1271
    %v1273 = vcombine.high %v1272, %v1272
    %v1275 = vunpack.c.l.s4 1966171168
    %v1276 = vunpack.c.0.s8 %v1275
    %v1277 = vlaneseq
    %v1278 = vshrl.u32 %v1277, 7
    %v1279 = vsub.s32 %v1276, %v1278
    %v1280 = vrot.slane %v1272, %v1279
    %v1282 = vunpack.c.l.s4 1966171168
    %v1283 = vunpack.c.0.s8 %v1282
    %v1284 = vlaneseq
    %v1285 = vshrl.u32 %v1284, 7
    %v1286 = vsub.s32 %v1283, %v1285
    %v1287 = vrot.slane %v1273, %v1286
    %v1288 = vlaneseq
    %v1289 = vshrl.u32 %v1288, 7
    %v1290 = vsub.s32 0, %v1289
    %v1291 = vrot.slane %v1280, %v1290
    %v1292 = vlaneseq
    %v1293 = vshrl.u32 %v1292, 7
    %v1294 = vsub.s32 0, %v1293
    %v1295 = vrot.slane %v1287, %v1294
    %1296 = vrot.lane.b32.xlu0 %v1291, 80
    %v1297 = vpop.permute.xlu0 %1296
    %1298 = vrot.lane.b32.xlu0 %v1295, 80
    %v1299 = vpop.permute.xlu0 %1298
    %1302 = vst.msk [vmem:[#allocation9 + $0x4] sm:$0x1] %vm460, %v1297
    %1303 = vst.msk [vmem:[#allocation9 + $0xc] sm:$0x1] %vm460, %v1299
    %v1304 = vcombine.high %v1280, %v1280
    %v1305 = vcombine.high %v1287, %v1287
    %v1306 = vlaneseq
    %v1307 = vshrl.u32 %v1306, 7
    %v1308 = vsub.s32 0, %v1307
    %v1309 = vrot.slane %v1304, %v1308
    %v1310 = vlaneseq
    %v1311 = vshrl.u32 %v1310, 7
    %v1312 = vsub.s32 0, %v1311
    %v1313 = vrot.slane %v1305, %v1312
    %1314 = vrot.lane.b32.xlu0 %v1309, 96
    %v1315 = vpop.permute.xlu0 %1314
    %1316 = vrot.lane.b32.xlu0 %v1313, 96
    %v1317 = vpop.permute.xlu0 %1316
    %1320 = vst.msk [vmem:[#allocation9 + $0x3] sm:$0x1] %vm479, %v1315
    %1321 = vst.msk [vmem:[#allocation9 + $0xb] sm:$0x1] %vm479, %v1317
    %v1322 = vld [vmem:[#allocation2 + $0x5] sm:$0x1]
    %v1323 = vld [vmem:[#allocation2 + $0xd] sm:$0x1]
    %v1324 = vld [vmem:[#allocation2 + $0x2] sm:$0x1]
    %v1325 = vld [vmem:[#allocation2 + $0xa] sm:$0x1]
    %v1328 = vrot.slane %v1323, 7
    %v1329 = vsel %vm237, %v1328, %v1322
    %v1333 = vrot.slane %v1324, 6
    %v1334 = vrot.slane %v1325, 5
    %v1335 = vsel %vm244, %v1334, %v1333
    %v1337 = vsel %vm247, %v1329, %v1335
    %1338 = vrot.lane.b32.xlu0 %v1264, 80
    %v1339 = vpop.permute.xlu0 %1338
    %v1340 = vsel %vm255, %v1339, 0
    %1342 = vmatprep.subr.mxu0 0.0
    %1343 = vmatpush1.msra.mxu0 %v223
    %1344 = vmatprep.subr.mxu0 0.0
    %1345 = vmatpush1.msra.mxu0 %v224
    %1346 = vmatprep.subr.mxu0 0.0
    %1347 = vmatpush1.msra.mxu0 0.0
    %1348 = vmatprep.subr.mxu0 0.0
    %1349 = vmatpush1.msra.mxu0 0.0
    %1350 = vmatprep.subr.mxu0 0.0
    %1351 = vmatpush1.msra.mxu0 0.0
    %1352 = vmatprep.subr.mxu0 0.0
    %1353 = vmatpush1.msra.mxu0 0.0
    %1354 = vmatprep.subr.mxu0 0.0
    %1355 = vmatpush1.msra.mxu0 0.0
    %1356 = vmatprep.subr.mxu0 0.0
    %1357 = vmatpush1.msra.mxu0 0.0
    %1358 = vmatprep.subr.mxu0 0.0
    %1359 = vmatpush1.msra.mxu0 0.0
    %1360 = vmatprep.subr.mxu0 0.0
    %1361 = vmatpush1.msra.mxu0 0.0
    %1362 = vmatprep.subr.mxu0 0.0
    %1363 = vmatpush1.msra.mxu0 0.0
    %1364 = vmatprep.subr.mxu0 0.0
    %1365 = vmatpush1.msra.mxu0 0.0
    %1366 = vmatprep.subr.mxu0 0.0
    %1367 = vmatpush1.msra.mxu0 0.0
    %1368 = vmatprep.subr.mxu0 0.0
    %1369 = vmatpush1.msra.mxu0 0.0
    %1370 = vmatprep.subr.mxu0 0.0
    %1371 = vmatpush1.msra.mxu0 0.0
    %1372 = vmatprep.subr.mxu0 0.0
    %1373 = vmatpush1.msra.mxu0 0.0
    %1374 = vmatprep.subr.mxu0 0.0
    %1375 = vmatpush1.msra.mxu0 0.0
    %1376 = vmatprep.subr.mxu0 0.0
    %1377 = vmatpush1.msra.mxu0 0.0
    %1378 = vmatprep.subr.mxu0 0.0
    %1379 = vmatpush1.msra.mxu0 0.0
    %1380 = vmatprep.subr.mxu0 0.0
    %1381 = vmatpush1.msra.mxu0 0.0
    %1382 = vmatprep.subr.mxu0 0.0
    %1383 = vmatpush1.msra.mxu0 0.0
    %1384 = vmatprep.subr.mxu0 0.0
    %1385 = vmatpush1.msra.mxu0 0.0
    %1386 = vmatprep.subr.mxu0 0.0
    %1387 = vmatpush1.msra.mxu0 0.0
    %1388 = vmatprep.subr.mxu0 0.0
    %1389 = vmatpush1.msra.mxu0 0.0
    %1390 = vmatprep.subr.mxu0 0.0
    %1391 = vmatpush1.msra.mxu0 0.0
    %1392 = vmatprep.subr.mxu0 0.0
    %1393 = vmatpush1.msra.mxu0 0.0
    %1394 = vmatprep.subr.mxu0 0.0
    %1395 = vmatpush1.msra.mxu0 0.0
    %1396 = vmatprep.subr.mxu0 0.0
    %1397 = vmatpush1.msra.mxu0 0.0
    %1398 = vmatprep.subr.mxu0 0.0
    %1399 = vmatpush1.msra.mxu0 0.0
    %1400 = vmatprep.subr.mxu0 0.0
    %1401 = vmatpush1.msra.mxu0 0.0
    %1402 = vmatprep.subr.mxu0 0.0
    %1403 = vmatpush1.msra.mxu0 0.0
    %1404 = vmatprep.subr.mxu0 0.0
    %1405 = vmatpush1.msra.mxu0 0.0
    %1406 = vmatprep.mubr.f32.mxu0 0.0
    %1407 = vmatmul.mubr.f32.gmra.mrb[0].mxu0 %v1340
    %v1408 = vpop.f32.mrb[0].mxu0
    %v1409 = vadd.f32 %v253, %v1408
    %v1410 = vpop.f32.mrb[0].mxu0
    %1411 = vdwg.mxu0
    %v1412 = vsel %vm329, %v1409, 0.0
    %1413 = vadd.xlane.f32.xlu0 %v1412
    %v1414 = vpop.xlane.xlu0 %1413
    %v1415 = vmul.f32 %v1414, %v184
    %v1416 = vsub.f32 %v1409, %v1415
    %v1417 = vmul.f32 %v1416, %v1416
    %v1418 = vsel %vm329, %v1417, 0.0
    %1419 = vadd.xlane.f32.xlu0 %v1418
    %v1420 = vpop.xlane.xlu0 %1419
    %v1421 = vmul.f32 %v1420, %v184
    %v1422 = vadd.f32 %v1421, 1e-05
    %v1423 = vrsqrt.pop %v1422
    %v1424 = vmul.f32 %v1416, %v1423
    %v1425 = vmul.f32 %v1424, %v347
    %v1426 = vadd.f32 %v1425, %v354
    %v1427 = vadd.f32 %v1337, %v1426
    %v1428 = vxor.u32 %v1427, 2147483648
    %v1429 = vmul.f32 %v1428, 1.442695
    %v1430 = vpow.pop %v1429
    %v1431 = vadd.f32 %v1430, 1.0
    %v1432 = vrcp.pop %v1431
    %v1433 = vmul.f32 1.0, %v1432
    %v1434 = vtanh.pop %v1427
    %v1435 = vmul.f32 %v1433, %v1235
    %1437 = vrot.lane.b32.xlu0 %v1434, 96
    %v1438 = vpop.permute.xlu0 %1437
    %v1440 = vmul.f32 %v1433, %v1438
    %1442 = vrot.lane.b32.xlu0 %v1440, 16
    %v1443 = vpop.permute.xlu0 %1442
    %v1445 = vadd.f32 %v1435, %v1443
    %1447 = vrot.lane.b32.xlu0 %v1445, 112
    %v1448 = vpop.permute.xlu0 %1447
    %v1450 = vsel %vm380, %v1448, 0.0
    %1451 = vadd.xlane.f32.xlu0 %v1450
    %v1452 = vpop.xlane.xlu0 %1451
    %v1453 = vmul.f32 %v1452, %v384
    %v1454 = vsub.f32 %v1445, %v1453
    %v1455 = vmul.f32 %v1454, %v1454
    %1457 = vrot.lane.b32.xlu0 %v1455, 112
    %v1458 = vpop.permute.xlu0 %1457
    %v1460 = vsel %vm380, %v1458, 0.0
    %1461 = vadd.xlane.f32.xlu0 %v1460
    %v1462 = vpop.xlane.xlu0 %1461
    %v1463 = vmul.f32 %v1462, %v384
    %v1464 = vadd.f32 %v1463, 1e-05
    %v1465 = vrsqrt.pop %v1464
    %v1466 = vmul.f32 %v1454, %v1465
    %v1467 = vmul.f32 %v1466, %v405
    %v1468 = vadd.f32 %v1467, %v414
    %v1469 = vtanh.pop %v1468
    %1471 = vrot.lane.b32.xlu0 %v1469, 32
    %v1472 = vpop.permute.xlu0 %1471
    %v1474 = vmul.f32 %v1433, %v1472
    %v1477 = vunpack.c.l.s4 1966171168
    %v1478 = vunpack.c.0.s8 %v1477
    %v1479 = vlaneseq
    %v1480 = vshrl.u32 %v1479, 7
    %v1481 = vsub.s32 %v1478, %v1480
    %v1482 = vrot.slane %v1474, %v1481
    %v1483 = vcombine.high %v1482, %v1482
    %v1485 = vunpack.c.l.s4 1966171168
    %v1486 = vunpack.c.0.s8 %v1485
    %v1487 = vlaneseq
    %v1488 = vshrl.u32 %v1487, 7
    %v1489 = vsub.s32 %v1486, %v1488
    %v1490 = vrot.slane %v1482, %v1489
    %v1492 = vunpack.c.l.s4 1966171168
    %v1493 = vunpack.c.0.s8 %v1492
    %v1494 = vlaneseq
    %v1495 = vshrl.u32 %v1494, 7
    %v1496 = vsub.s32 %v1493, %v1495
    %v1497 = vrot.slane %v1483, %v1496
    %v1498 = vlaneseq
    %v1499 = vshrl.u32 %v1498, 7
    %v1500 = vsub.s32 0, %v1499
    %v1501 = vrot.slane %v1490, %v1500
    %v1502 = vlaneseq
    %v1503 = vshrl.u32 %v1502, 7
    %v1504 = vsub.s32 0, %v1503
    %v1505 = vrot.slane %v1497, %v1504
    %1506 = vrot.lane.b32.xlu0 %v1501, 80
    %v1507 = vpop.permute.xlu0 %1506
    %1508 = vrot.lane.b32.xlu0 %v1505, 80
    %v1509 = vpop.permute.xlu0 %1508
    %1512 = vst.msk [vmem:[#allocation9 + $0x5] sm:$0x1] %vm460, %v1507
    %1513 = vst.msk [vmem:[#allocation9 + $0xd] sm:$0x1] %vm460, %v1509
    %v1514 = vcombine.high %v1490, %v1490
    %v1515 = vcombine.high %v1497, %v1497
    %v1516 = vlaneseq
    %v1517 = vshrl.u32 %v1516, 7
    %v1518 = vsub.s32 0, %v1517
    %v1519 = vrot.slane %v1514, %v1518
    %v1520 = vlaneseq
    %v1521 = vshrl.u32 %v1520, 7
    %v1522 = vsub.s32 0, %v1521
    %v1523 = vrot.slane %v1515, %v1522
    %1524 = vrot.lane.b32.xlu0 %v1519, 96
    %v1525 = vpop.permute.xlu0 %1524
    %1526 = vrot.lane.b32.xlu0 %v1523, 96
    %v1527 = vpop.permute.xlu0 %1526
    %1530 = vst.msk [vmem:[#allocation9 + $0x2] sm:$0x1] %vm479, %v1525
    %1531 = vst.msk [vmem:[#allocation9 + $0xa] sm:$0x1] %vm479, %v1527
    %v1532 = vld [vmem:[#allocation2 + $0x6] sm:$0x1]
    %v1533 = vld [vmem:[#allocation2 + $0xe] sm:$0x1]
    %v1534 = vld [vmem:[#allocation2 + $0x1] sm:$0x1]
    %v1535 = vld [vmem:[#allocation2 + $0x9] sm:$0x1]
    %v1538 = vrot.slane %v1533, 7
    %v1539 = vsel %vm237, %v1538, %v1532
    %v1543 = vrot.slane %v1534, 6
    %v1544 = vrot.slane %v1535, 5
    %v1545 = vsel %vm244, %v1544, %v1543
    %v1547 = vsel %vm247, %v1539, %v1545
    %1548 = vrot.lane.b32.xlu0 %v1474, 80
    %v1549 = vpop.permute.xlu0 %1548
    %v1550 = vsel %vm255, %v1549, 0
    %1552 = vmatprep.subr.mxu0 0.0
    %1553 = vmatpush1.msra.mxu0 %v223
    %1554 = vmatprep.subr.mxu0 0.0
    %1555 = vmatpush1.msra.mxu0 %v224
    %1556 = vmatprep.subr.mxu0 0.0
    %1557 = vmatpush1.msra.mxu0 0.0
    %1558 = vmatprep.subr.mxu0 0.0
    %1559 = vmatpush1.msra.mxu0 0.0
    %1560 = vmatprep.subr.mxu0 0.0
    %1561 = vmatpush1.msra.mxu0 0.0
    %1562 = vmatprep.subr.mxu0 0.0
    %1563 = vmatpush1.msra.mxu0 0.0
    %1564 = vmatprep.subr.mxu0 0.0
    %1565 = vmatpush1.msra.mxu0 0.0
    %1566 = vmatprep.subr.mxu0 0.0
    %1567 = vmatpush1.msra.mxu0 0.0
    %1568 = vmatprep.subr.mxu0 0.0
    %1569 = vmatpush1.msra.mxu0 0.0
    %1570 = vmatprep.subr.mxu0 0.0
    %1571 = vmatpush1.msra.mxu0 0.0
    %1572 = vmatprep.subr.mxu0 0.0
    %1573 = vmatpush1.msra.mxu0 0.0
    %1574 = vmatprep.subr.mxu0 0.0
    %1575 = vmatpush1.msra.mxu0 0.0
    %1576 = vmatprep.subr.mxu0 0.0
    %1577 = vmatpush1.msra.mxu0 0.0
    %1578 = vmatprep.subr.mxu0 0.0
    %1579 = vmatpush1.msra.mxu0 0.0
    %1580 = vmatprep.subr.mxu0 0.0
    %1581 = vmatpush1.msra.mxu0 0.0
    %1582 = vmatprep.subr.mxu0 0.0
    %1583 = vmatpush1.msra.mxu0 0.0
    %1584 = vmatprep.subr.mxu0 0.0
    %1585 = vmatpush1.msra.mxu0 0.0
    %1586 = vmatprep.subr.mxu0 0.0
    %1587 = vmatpush1.msra.mxu0 0.0
    %1588 = vmatprep.subr.mxu0 0.0
    %1589 = vmatpush1.msra.mxu0 0.0
    %1590 = vmatprep.subr.mxu0 0.0
    %1591 = vmatpush1.msra.mxu0 0.0
    %1592 = vmatprep.subr.mxu0 0.0
    %1593 = vmatpush1.msra.mxu0 0.0
    %1594 = vmatprep.subr.mxu0 0.0
    %1595 = vmatpush1.msra.mxu0 0.0
    %1596 = vmatprep.subr.mxu0 0.0
    %1597 = vmatpush1.msra.mxu0 0.0
    %1598 = vmatprep.subr.mxu0 0.0
    %1599 = vmatpush1.msra.mxu0 0.0
    %1600 = vmatprep.subr.mxu0 0.0
    %1601 = vmatpush1.msra.mxu0 0.0
    %1602 = vmatprep.subr.mxu0 0.0
    %1603 = vmatpush1.msra.mxu0 0.0
    %1604 = vmatprep.subr.mxu0 0.0
    %1605 = vmatpush1.msra.mxu0 0.0
    %1606 = vmatprep.subr.mxu0 0.0
    %1607 = vmatpush1.msra.mxu0 0.0
    %1608 = vmatprep.subr.mxu0 0.0
    %1609 = vmatpush1.msra.mxu0 0.0
    %1610 = vmatprep.subr.mxu0 0.0
    %1611 = vmatpush1.msra.mxu0 0.0
    %1612 = vmatprep.subr.mxu0 0.0
    %1613 = vmatpush1.msra.mxu0 0.0
    %1614 = vmatprep.subr.mxu0 0.0
    %1615 = vmatpush1.msra.mxu0 0.0
    %1616 = vmatprep.mubr.f32.mxu0 0.0
    %1617 = vmatmul.mubr.f32.gmra.mrb[0].mxu0 %v1550
    %v1618 = vpop.f32.mrb[0].mxu0
    %v1619 = vadd.f32 %v253, %v1618
    %v1620 = vpop.f32.mrb[0].mxu0
    %1621 = vdwg.mxu0
    %v1622 = vsel %vm329, %v1619, 0.0
    %1623 = vadd.xlane.f32.xlu0 %v1622
    %v1624 = vpop.xlane.xlu0 %1623
    %v1625 = vmul.f32 %v1624, %v184
    %v1626 = vsub.f32 %v1619, %v1625
    %v1627 = vmul.f32 %v1626, %v1626
    %v1628 = vsel %vm329, %v1627, 0.0
    %1629 = vadd.xlane.f32.xlu0 %v1628
    %v1630 = vpop.xlane.xlu0 %1629
    %v1631 = vmul.f32 %v1630, %v184
    %v1632 = vadd.f32 %v1631, 1e-05
    %v1633 = vrsqrt.pop %v1632
    %v1634 = vmul.f32 %v1626, %v1633
    %v1635 = vmul.f32 %v1634, %v347
    %v1636 = vadd.f32 %v1635, %v354
    %v1637 = vadd.f32 %v1547, %v1636
    %v1638 = vxor.u32 %v1637, 2147483648
    %v1639 = vmul.f32 %v1638, 1.442695
    %v1640 = vpow.pop %v1639
    %v1641 = vadd.f32 %v1640, 1.0
    %v1642 = vrcp.pop %v1641
    %v1643 = vmul.f32 1.0, %v1642
    %v1644 = vtanh.pop %v1637
    %v1645 = vmul.f32 %v1643, %v1445
    %1647 = vrot.lane.b32.xlu0 %v1644, 96
    %v1648 = vpop.permute.xlu0 %1647
    %v1650 = vmul.f32 %v1643, %v1648
    %1652 = vrot.lane.b32.xlu0 %v1650, 16
    %v1653 = vpop.permute.xlu0 %1652
    %v1655 = vadd.f32 %v1645, %v1653
    %1657 = vrot.lane.b32.xlu0 %v1655, 112
    %v1658 = vpop.permute.xlu0 %1657
    %v1660 = vsel %vm380, %v1658, 0.0
    %1661 = vadd.xlane.f32.xlu0 %v1660
    %v1662 = vpop.xlane.xlu0 %1661
    %v1663 = vmul.f32 %v1662, %v384
    %v1664 = vsub.f32 %v1655, %v1663
    %v1665 = vmul.f32 %v1664, %v1664
    %1667 = vrot.lane.b32.xlu0 %v1665, 112
    %v1668 = vpop.permute.xlu0 %1667
    %v1670 = vsel %vm380, %v1668, 0.0
    %1671 = vadd.xlane.f32.xlu0 %v1670
    %v1672 = vpop.xlane.xlu0 %1671
    %v1673 = vmul.f32 %v1672, %v384
    %v1674 = vadd.f32 %v1673, 1e-05
    %v1675 = vrsqrt.pop %v1674
    %v1676 = vmul.f32 %v1664, %v1675
    %v1677 = vmul.f32 %v1676, %v405
    %v1678 = vadd.f32 %v1677, %v414
    %v1679 = vtanh.pop %v1678
    %1681 = vrot.lane.b32.xlu0 %v1679, 32
    %v1682 = vpop.permute.xlu0 %1681
    %v1684 = vmul.f32 %v1643, %v1682
    %v1687 = vunpack.c.l.s4 1966171168
    %v1688 = vunpack.c.0.s8 %v1687
    %v1689 = vlaneseq
    %v1690 = vshrl.u32 %v1689, 7
    %v1691 = vsub.s32 %v1688, %v1690
    %v1692 = vrot.slane %v1684, %v1691
    %v1693 = vcombine.high %v1692, %v1692
    %v1695 = vunpack.c.l.s4 1966171168
    %v1696 = vunpack.c.0.s8 %v1695
    %v1697 = vlaneseq
    %v1698 = vshrl.u32 %v1697, 7
    %v1699 = vsub.s32 %v1696, %v1698
    %v1700 = vrot.slane %v1692, %v1699
    %v1702 = vunpack.c.l.s4 1966171168
    %v1703 = vunpack.c.0.s8 %v1702
    %v1704 = vlaneseq
    %v1705 = vshrl.u32 %v1704, 7
    %v1706 = vsub.s32 %v1703, %v1705
    %v1707 = vrot.slane %v1693, %v1706
    %v1708 = vlaneseq
    %v1709 = vshrl.u32 %v1708, 7
    %v1710 = vsub.s32 0, %v1709
    %v1711 = vrot.slane %v1700, %v1710
    %v1712 = vlaneseq
    %v1713 = vshrl.u32 %v1712, 7
    %v1714 = vsub.s32 0, %v1713
    %v1715 = vrot.slane %v1707, %v1714
    %1716 = vrot.lane.b32.xlu0 %v1711, 80
    %v1717 = vpop.permute.xlu0 %1716
    %1718 = vrot.lane.b32.xlu0 %v1715, 80
    %v1719 = vpop.permute.xlu0 %1718
    %1722 = vst.msk [vmem:[#allocation9 + $0x6] sm:$0x1] %vm460, %v1717
    %1723 = vst.msk [vmem:[#allocation9 + $0xe] sm:$0x1] %vm460, %v1719
    %v1724 = vcombine.high %v1700, %v1700
    %v1725 = vcombine.high %v1707, %v1707
    %v1726 = vlaneseq
    %v1727 = vshrl.u32 %v1726, 7
    %v1728 = vsub.s32 0, %v1727
    %v1729 = vrot.slane %v1724, %v1728
    %v1730 = vlaneseq
    %v1731 = vshrl.u32 %v1730, 7
    %v1732 = vsub.s32 0, %v1731
    %v1733 = vrot.slane %v1725, %v1732
    %1734 = vrot.lane.b32.xlu0 %v1729, 96
    %v1735 = vpop.permute.xlu0 %1734
    %1736 = vrot.lane.b32.xlu0 %v1733, 96
    %v1737 = vpop.permute.xlu0 %1736
    %1740 = vst.msk [vmem:[#allocation9 + $0x1] sm:$0x1] %vm479, %v1735
    %1741 = vst.msk [vmem:[#allocation9 + $0x9] sm:$0x1] %vm479, %v1737
    %v1742 = vld [vmem:[#allocation2 + $0x7] sm:$0x1]
    %v1743 = vld [vmem:[#allocation2 + $0xf] sm:$0x1]
    %v1744 = vld [vmem:[#allocation2] sm:$0x1]
    %v1745 = vld [vmem:[#allocation2 + $0x8] sm:$0x1]
    %v1748 = vrot.slane %v1743, 7
    %v1749 = vsel %vm237, %v1748, %v1742
    %v1753 = vrot.slane %v1744, 6
    %v1754 = vrot.slane %v1745, 5
    %v1755 = vsel %vm244, %v1754, %v1753
    %v1757 = vsel %vm247, %v1749, %v1755
    %1758 = vrot.lane.b32.xlu0 %v1684, 80
    %v1759 = vpop.permute.xlu0 %1758
    %v1760 = vsel %vm255, %v1759, 0
    %1762 = vmatprep.subr.mxu0 0.0
    %1763 = vmatpush1.msra.mxu0 %v223
    %1764 = vmatprep.subr.mxu0 0.0
    %1765 = vmatpush1.msra.mxu0 %v224
    %1766 = vmatprep.subr.mxu0 0.0
    %1767 = vmatpush1.msra.mxu0 0.0
    %1768 = vmatprep.subr.mxu0 0.0
    %1769 = vmatpush1.msra.mxu0 0.0
    %1770 = vmatprep.subr.mxu0 0.0
    %1771 = vmatpush1.msra.mxu0 0.0
    %1772 = vmatprep.subr.mxu0 0.0
    %1773 = vmatpush1.msra.mxu0 0.0
    %1774 = vmatprep.subr.mxu0 0.0
    %1775 = vmatpush1.msra.mxu0 0.0
    %1776 = vmatprep.subr.mxu0 0.0
    %1777 = vmatpush1.msra.mxu0 0.0
    %1778 = vmatprep.subr.mxu0 0.0
    %1779 = vmatpush1.msra.mxu0 0.0
    %1780 = vmatprep.subr.mxu0 0.0
    %1781 = vmatpush1.msra.mxu0 0.0
    %1782 = vmatprep.subr.mxu0 0.0
    %1783 = vmatpush1.msra.mxu0 0.0
    %1784 = vmatprep.subr.mxu0 0.0
    %1785 = vmatpush1.msra.mxu0 0.0
    %1786 = vmatprep.subr.mxu0 0.0
    %1787 = vmatpush1.msra.mxu0 0.0
    %1788 = vmatprep.subr.mxu0 0.0
    %1789 = vmatpush1.msra.mxu0 0.0
    %1790 = vmatprep.subr.mxu0 0.0
    %1791 = vmatpush1.msra.mxu0 0.0
    %1792 = vmatprep.subr.mxu0 0.0
    %1793 = vmatpush1.msra.mxu0 0.0
    %1794 = vmatprep.subr.mxu0 0.0
    %1795 = vmatpush1.msra.mxu0 0.0
    %1796 = vmatprep.subr.mxu0 0.0
    %1797 = vmatpush1.msra.mxu0 0.0
    %1798 = vmatprep.subr.mxu0 0.0
    %1799 = vmatpush1.msra.mxu0 0.0
    %1800 = vmatprep.subr.mxu0 0.0
    %1801 = vmatpush1.msra.mxu0 0.0
    %1802 = vmatprep.subr.mxu0 0.0
    %1803 = vmatpush1.msra.mxu0 0.0
    %1804 = vmatprep.subr.mxu0 0.0
    %1805 = vmatpush1.msra.mxu0 0.0
    %1806 = vmatprep.subr.mxu0 0.0
    %1807 = vmatpush1.msra.mxu0 0.0
    %1808 = vmatprep.subr.mxu0 0.0
    %1809 = vmatpush1.msra.mxu0 0.0
    %1810 = vmatprep.subr.mxu0 0.0
    %1811 = vmatpush1.msra.mxu0 0.0
    %1812 = vmatprep.subr.mxu0 0.0
    %1813 = vmatpush1.msra.mxu0 0.0
    %1814 = vmatprep.subr.mxu0 0.0
    %1815 = vmatpush1.msra.mxu0 0.0
    %1816 = vmatprep.subr.mxu0 0.0
    %1817 = vmatpush1.msra.mxu0 0.0
    %1818 = vmatprep.subr.mxu0 0.0
    %1819 = vmatpush1.msra.mxu0 0.0
    %1820 = vmatprep.subr.mxu0 0.0
    %1821 = vmatpush1.msra.mxu0 0.0
    %1822 = vmatprep.subr.mxu0 0.0
    %1823 = vmatpush1.msra.mxu0 0.0
    %1824 = vmatprep.subr.mxu0 0.0
    %1825 = vmatpush1.msra.mxu0 0.0
    %1826 = vmatprep.mubr.f32.mxu0 0.0
    %1827 = vmatmul.mubr.f32.gmra.mrb[0].mxu0 %v1760
    %v1828 = vpop.f32.mrb[0].mxu0
    %v1829 = vadd.f32 %v253, %v1828
    %v1830 = vpop.f32.mrb[0].mxu0
    %1831 = vdwg.mxu0
    %v1832 = vsel %vm329, %v1829, 0.0
    %1833 = vadd.xlane.f32.xlu0 %v1832
    %v1834 = vpop.xlane.xlu0 %1833
    %v1835 = vmul.f32 %v1834, %v184
    %v1836 = vsub.f32 %v1829, %v1835
    %v1837 = vmul.f32 %v1836, %v1836
    %v1838 = vsel %vm329, %v1837, 0.0
    %1839 = vadd.xlane.f32.xlu0 %v1838
    %v1840 = vpop.xlane.xlu0 %1839
    %v1841 = vmul.f32 %v1840, %v184
    %v1842 = vadd.f32 %v1841, 1e-05
    %v1843 = vrsqrt.pop %v1842
    %v1844 = vmul.f32 %v1836, %v1843
    %v1845 = vmul.f32 %v1844, %v347
    %v1846 = vadd.f32 %v1845, %v354
    %v1847 = vadd.f32 %v1757, %v1846
    %v1848 = vxor.u32 %v1847, 2147483648
    %v1849 = vmul.f32 %v1848, 1.442695
    %v1850 = vpow.pop %v1849
    %v1851 = vadd.f32 %v1850, 1.0
    %v1852 = vrcp.pop %v1851
    %v1853 = vmul.f32 1.0, %v1852
    %v1854 = vtanh.pop %v1847
    %v1855 = vmul.f32 %v1853, %v1655
    %1857 = vrot.lane.b32.xlu0 %v1854, 96
    %v1858 = vpop.permute.xlu0 %1857
    %v1860 = vmul.f32 %v1853, %v1858
    %1862 = vrot.lane.b32.xlu0 %v1860, 16
    %v1863 = vpop.permute.xlu0 %1862
    %v1865 = vadd.f32 %v1855, %v1863
    %1867 = vrot.lane.b32.xlu0 %v1865, 112
    %v1868 = vpop.permute.xlu0 %1867
    %v1870 = vsel %vm380, %v1868, 0.0
    %1871 = vadd.xlane.f32.xlu0 %v1870
    %v1872 = vpop.xlane.xlu0 %1871
    %v1873 = vmul.f32 %v1872, %v384
    %v1874 = vsub.f32 %v1865, %v1873
    %v1875 = vmul.f32 %v1874, %v1874
    %1877 = vrot.lane.b32.xlu0 %v1875, 112
    %v1878 = vpop.permute.xlu0 %1877
    %v1880 = vsel %vm380, %v1878, 0.0
    %1881 = vadd.xlane.f32.xlu0 %v1880
    %v1882 = vpop.xlane.xlu0 %1881
    %v1883 = vmul.f32 %v1882, %v384
    %v1884 = vadd.f32 %v1883, 1e-05
    %v1885 = vrsqrt.pop %v1884
    %v1886 = vmul.f32 %v1874, %v1885
    %v1887 = vmul.f32 %v1886, %v405
    %v1888 = vadd.f32 %v1887, %v414
    %v1889 = vtanh.pop %v1888
    %1891 = vrot.lane.b32.xlu0 %v1889, 32
    %v1892 = vpop.permute.xlu0 %1891
    %v1894 = vmul.f32 %v1853, %v1892
    %v1897 = vunpack.c.l.s4 1966171168
    %v1898 = vunpack.c.0.s8 %v1897
    %v1899 = vlaneseq
    %v1900 = vshrl.u32 %v1899, 7
    %v1901 = vsub.s32 %v1898, %v1900
    %v1902 = vrot.slane %v1894, %v1901
    %v1903 = vcombine.high %v1902, %v1902
    %v1905 = vunpack.c.l.s4 1966171168
    %v1906 = vunpack.c.0.s8 %v1905
    %v1907 = vlaneseq
    %v1908 = vshrl.u32 %v1907, 7
    %v1909 = vsub.s32 %v1906, %v1908
    %v1910 = vrot.slane %v1902, %v1909
    %v1912 = vunpack.c.l.s4 1966171168
    %v1913 = vunpack.c.0.s8 %v1912
    %v1914 = vlaneseq
    %v1915 = vshrl.u32 %v1914, 7
    %v1916 = vsub.s32 %v1913, %v1915
    %v1917 = vrot.slane %v1903, %v1916
    %v1918 = vlaneseq
    %v1919 = vshrl.u32 %v1918, 7
    %v1920 = vsub.s32 0, %v1919
    %v1921 = vrot.slane %v1910, %v1920
    %v1922 = vlaneseq
    %v1923 = vshrl.u32 %v1922, 7
    %v1924 = vsub.s32 0, %v1923
    %v1925 = vrot.slane %v1917, %v1924
    %1926 = vrot.lane.b32.xlu0 %v1921, 80
    %v1927 = vpop.permute.xlu0 %1926
    %1928 = vrot.lane.b32.xlu0 %v1925, 80
    %v1929 = vpop.permute.xlu0 %1928
    %1932 = vst.msk [vmem:[#allocation9 + $0x7] sm:$0x1] %vm460, %v1927
    %1933 = vst.msk [vmem:[#allocation9 + $0xf] sm:$0x1] %vm460, %v1929
    %v1934 = vcombine.high %v1910, %v1910
    %v1935 = vcombine.high %v1917, %v1917
    %v1936 = vlaneseq
    %v1937 = vshrl.u32 %v1936, 7
    %v1938 = vsub.s32 0, %v1937
    %v1939 = vrot.slane %v1934, %v1938
    %v1940 = vlaneseq
    %v1941 = vshrl.u32 %v1940, 7
    %v1942 = vsub.s32 0, %v1941
    %v1943 = vrot.slane %v1935, %v1942
    %1944 = vrot.lane.b32.xlu0 %v1939, 96
    %v1945 = vpop.permute.xlu0 %1944
    %1946 = vrot.lane.b32.xlu0 %v1943, 96
    %v1947 = vpop.permute.xlu0 %1946
    %1950 = vst.msk [vmem:[#allocation9] sm:$0x1] %vm479, %v1945
    %1951 = vst.msk [vmem:[#allocation9 + $0x8] sm:$0x1] %vm479, %v1947
    // Predicated region
    $region58: #{tpu_custom_call.1} parent=1 // pred_check
      _
    $region59: #{tpu_custom_call.1} parent=1 // pred_check_branch
      %1953 = sbr.rel (0) target = $region61
    $region60: #{tpu_custom_call.1} parent=1 // pred_region
      %s1955 = ssub.s32 256, 256
      %1956 = vsyncadd [#allocation5], %s1955
      %s1957 = sshll.u32 [#allocation9], 4
      %s1958 = int_to_ptr.vmem [resolvable:$true] %s1957
      %1963 = dma.vmem_to_hbm [thread:$0]  %s1958, 256, %s11, [#allocation5], 128, 128, 8
    $region61: #{tpu_custom_call.1} parent=1 // pred_fallthru
      _
    // Predicated region
    $region62: #{tpu_custom_call.1} parent=1 // pred_check
      _
    $region63: #{tpu_custom_call.1} parent=1 // pred_check_branch
      %1965 = sbr.rel (0) target = $region65
    $region64: #{tpu_custom_call.1} parent=1 // pred_region
      %1966 = dma.done [#allocation5], 256
    $region65: #{tpu_custom_call.1} parent=1 // pred_fallthru
      _
    %1967 = vsyncpa [#allocation4], 1
    %1968 = vsyncpa [#allocation7], 1
    %1969 = vsyncpa [#allocation5], 1

</llo_original>
